<compile_context>
chip_gen: v7x
topology: tpu7x:2x2x1
jax: 0.10.0
libtpu: 0.0.40
codegen_flags: <defaults>
</compile_context>

<pallas_src>
import jax
import jax.numpy as jnp
from jax.experimental import pallas as pl
from jax.experimental.pallas import tpu as pltpu


def _round_up(n, m):
    return ((n + m - 1) // m) * m


def _output_net_kernel(x_ref, w1_ref, sb1_ref, w2_ref, sb2_ref, w3_ref, sb3_ref,
                       o_ref):
    # x_ref : (tb, in_p)   f32   (cast to bf16 here, not in the wrapper)
    # w*_ref: int8 weights, zero-padded to 128-multiples, per-column quantized
    # sb*   : (2, N) f32 -- row 0 = dequant scale, row 1 = bias
    # Per-output-channel scale commutes with the matmul, so dequant is just an
    # int8->bf16 convert of the weights; the scale hits the small accumulator.
    x = x_ref[...].astype(jnp.bfloat16)

    w1 = w1_ref[...].astype(jnp.float32).astype(jnp.bfloat16)
    a1 = jnp.dot(x, w1, preferred_element_type=jnp.float32)
    h1 = jnp.maximum(a1 * sb1_ref[0:1, :] + sb1_ref[1:2, :], 0.0)   # fc1+ReLU (dropout1=id)

    w2 = w2_ref[...].astype(jnp.float32).astype(jnp.bfloat16)
    a2 = jnp.dot(h1.astype(jnp.bfloat16), w2, preferred_element_type=jnp.float32)
    h2 = jnp.maximum(a2 * sb2_ref[0:1, :] + sb2_ref[1:2, :], 0.0)   # fc2+ReLU (dropout2=id)

    w3 = w3_ref[...].astype(jnp.float32).astype(jnp.bfloat16)
    a3 = jnp.dot(h2.astype(jnp.bfloat16), w3, preferred_element_type=jnp.float32)
    o_ref[...] = (a3 * sb3_ref[0:1, :] + sb3_ref[1:2, :]).astype(o_ref.dtype)   # fc3


def output_net_forward(x, packed, output_n):
    """x: [B, C, H, W] float32.  packed: int8 weights + (scale,bias) from pack_params."""
    B = x.shape[0]
    w1q, sb1 = packed["w1"], packed["sb1"]
    w2q, sb2 = packed["w2"], packed["sb2"]
    w3q, sb3 = packed["w3"], packed["sb3"]
    in_p = w1q.shape[0]
    out_p = w3q.shape[1]

    x2d = x.reshape(B, -1)                 # torch: x.view(B, -1); stays f32

    # Batch tiling: sublane-aligned single step at tiny B; >=2 (pipelined,
    # megacore-shardable) steps once B grows; tb=128 when B is just past 256
    # so the trailing block isn't mostly padding.
    if B <= 256:
        tb = _round_up(B, 8)
    elif B <= 512:
        tb = 128
    else:
        tb = 256
    Bp = _round_up(B, tb)

    pad_k = in_p - x2d.shape[1]
    if Bp != B or pad_k:
        x2d = jnp.pad(x2d, ((0, Bp - B), (0, pad_k)))

    grid = (Bp // tb,)
    const = lambda a: pl.BlockSpec(a.shape, lambda i: (0, 0))   # VMEM-resident, fetched once

    flops = 2 * Bp * (w1q.shape[0] * w1q.shape[1]
                      + w2q.shape[0] * w2q.shape[1]
                      + w3q.shape[0] * w3q.shape[1])
    bytes_accessed = (x2d.size * 4                        # f32 activations in
                      + w1q.size + w2q.size + w3q.size    # int8 weights
                      + (sb1.size + sb2.size + sb3.size) * 4
                      + Bp * out_p * 4)                   # f32 output

    out = pl.pallas_call(
        _output_net_kernel,
        out_shape=jax.ShapeDtypeStruct((Bp, out_p), jnp.float32),
        grid_spec=pltpu.PrefetchScalarGridSpec(
            num_scalar_prefetch=0,
            grid=grid,
            in_specs=[pl.BlockSpec((tb, in_p), lambda i: (i, 0)),
                      const(w1q), const(sb1),
                      const(w2q), const(sb2),
                      const(w3q), const(sb3)],
            out_specs=pl.BlockSpec((tb, out_p), lambda i: (i, 0)),
        ),
        compiler_params=pltpu.CompilerParams(
            dimension_semantics=("parallel",)),
        cost_estimate=pl.CostEstimate(
            flops=flops, transcendentals=0, bytes_accessed=bytes_accessed),
    )(x2d, w1q, sb1, w2q, sb2, w3q, sb3)

    return out[:B, :output_n]


def init_params(key, input_n, output_n, mid_n=None):
    """Deterministic f32 init mirroring OutputNet.__init__ shapes (logical, unpadded)."""
    if mid_n is None:
        mid_n = int((input_n + output_n) / 2)
    mid2 = mid_n // 2
    ks = jax.random.split(key, 6)

    def lin(kw, kb, fan_in, fan_out):
        bound = 1.0 / jnp.sqrt(fan_in)
        w = jax.random.uniform(kw, (fan_in, fan_out), jnp.float32, -bound, bound)
        b = jax.random.uniform(kb, (1, fan_out), jnp.float32, -bound, bound)
        return w, b

    w1, b1 = lin(ks[0], ks[1], input_n, mid_n)
    w2, b2 = lin(ks[2], ks[3], mid_n, mid2)
    w3, b3 = lin(ks[4], ks[5], mid2, output_n)
    return {"w1": w1, "b1": b1, "w2": w2, "b2": b2, "w3": w3, "b3": b3}


def _quantize_per_col(w):
    """Symmetric per-output-channel int8 quantization. Returns (q_int8, scale_f32[1,N])."""
    amax = jnp.max(jnp.abs(w), axis=0, keepdims=True)
    scale = jnp.maximum(amax, 1e-12) / 127.0
    q = jnp.clip(jnp.round(w / scale), -127, 127).astype(jnp.int8)
    return q, scale.astype(jnp.float32)


def pack_params(params):
    """Quantize weights to int8 (per-output-channel), pad all feature dims to
    128-multiples, and pack (scale, bias) into one (2, N) f32 array per layer."""
    in_n, mid_n = params["w1"].shape
    mid2 = params["w2"].shape[1]
    out_n = params["w3"].shape[1]
    in_p = _round_up(in_n, 128)
    mid_p = _round_up(mid_n, 128)
    mid2_p = _round_up(mid2, 128)
    out_p = _round_up(out_n, 128)

    def pack_layer(w, b, kp, npad):
        q, s = _quantize_per_col(w)
        qp = jnp.pad(q, ((0, kp - q.shape[0]), (0, npad - q.shape[1])))          # zeros
        sp = jnp.pad(s, ((0, 0), (0, npad - s.shape[1])), constant_values=1.0)   # scale 1 on pad
        bp = jnp.pad(b, ((0, 0), (0, npad - b.shape[1]))).astype(jnp.float32)    # bias 0 on pad
        sb = jnp.concatenate([sp, bp], axis=0)                                   # (2, npad) f32
        return qp, sb

    w1q, sb1 = pack_layer(params["w1"], params["b1"], in_p, mid_p)
    w2q, sb2 = pack_layer(params["w2"], params["b2"], mid_p, mid2_p)
    w3q, sb3 = pack_layer(params["w3"], params["b3"], mid2_p, out_p)
    return {"w1": w1q, "sb1": sb1, "w2": w2q, "sb2": sb2, "w3": w3q, "sb3": sb3}


def _ref_forward_quant(x, packed, output_n):
    """Pure-JAX reference reproducing the kernel's quantized/bf16 math exactly:
    bf16 activations, int8 weights (exact in bf16), f32 accumulate, post-scale."""
    hi = jax.lax.Precision.HIGHEST
    bf = lambda a: a.astype(jnp.bfloat16).astype(jnp.float32)
    B = x.shape[0]
    h = x.reshape(B, -1).astype(jnp.float32)
    in_p = packed["w1"].shape[0]
    if h.shape[1] != in_p:
        h = jnp.pad(h, ((0, 0), (0, in_p - h.shape[1])))

    def layer(h, wq, sb, relu):
        acc = jnp.dot(bf(h), wq.astype(jnp.float32), precision=hi)
        y = acc * sb[0:1, :] + sb[1:2, :]
        return jnp.maximum(y, 0.0) if relu else y

    h = layer(h, packed["w1"], packed["sb1"], True)
    h = layer(h, packed["w2"], packed["sb2"], True)
    h = layer(h, packed["w3"], packed["sb3"], False)
    return h[:, :output_n]


def _ref_forward_f32(x, params):
    """Full-precision reference (exact PyTorch eval-mode math) for a sanity check."""
    hi = jax.lax.Precision.HIGHEST
    h = x.reshape(x.shape[0], -1)
    h = jnp.maximum(jnp.dot(h, params["w1"], precision=hi) + params["b1"], 0.0)
    h = jnp.maximum(jnp.dot(h, params["w2"], precision=hi) + params["b2"], 0.0)
    return jnp.dot(h, params["w3"], precision=hi) + params["b3"]


if __name__ == "__main__":
    key = jax.random.PRNGKey(0)
    k_x, k_p = jax.random.split(key)

    B, C, H, W = 2, 4, 16, 16              # input_n = C*H*W = 1024
    input_n = C * H * W
    output_n = 32

    x = jax.random.normal(k_x, (B, C, H, W), jnp.float32)
    params = init_params(k_p, input_n, output_n)   # logical f32 params
    packed = pack_params(params)                   # padded int8 weights + scale/bias for kernel

    out = output_net_forward(x, packed, output_n)
    out = jax.block_until_ready(out)
    assert out.shape == (B, output_n)

    # Tight check vs. a reference that uses the same int8/bf16 quantized math.
    ref_q = _ref_forward_quant(x, packed, output_n)
    assert jnp.allclose(out, ref_q, atol=2e-3, rtol=2e-3), "mismatch vs quantized reference"

    # Loose sanity check vs. the full-f32 PyTorch-equivalent math.
    ref_f32 = _ref_forward_f32(x, params)
    assert jnp.allclose(out, ref_f32, atol=5e-2, rtol=5e-2), "mismatch vs f32 reference"

    print("KERNEL_OK")
</pallas_src>

<mosaic_0001>
module attributes {stable_mosaic.version = 11 : i64} {
  func.func @_output_net_kernel(%arg0: i32, %arg1: memref<8x1024xf32, #tpu.memory_space<vmem>>, %arg2: memref<1024x640xi8, #tpu.memory_space<vmem>>, %arg3: memref<2x640xf32, #tpu.memory_space<vmem>>, %arg4: memref<640x384xi8, #tpu.memory_space<vmem>>, %arg5: memref<2x384xf32, #tpu.memory_space<vmem>>, %arg6: memref<384x128xi8, #tpu.memory_space<vmem>>, %arg7: memref<2x128xf32, #tpu.memory_space<vmem>>, %arg8: memref<8x128xf32, #tpu.memory_space<vmem>>) attributes {dimension_semantics = [#tpu.dimension_semantics<parallel>], iteration_bounds = array<i64: 1>, scalar_prefetch = 0 : i64, scratch_operands = 0 : i64, tpu.core_type = #tpu.core_type<tc>, window_params = [{transform_indices = @transform_0, window_bounds = array<i64: 8, 1024>}, {pipeline_mode = #tpu.pipeline_mode<synchronous>, transform_indices = @transform_1, window_bounds = array<i64: 1024, 640>}, {pipeline_mode = #tpu.pipeline_mode<synchronous>, transform_indices = @transform_2, window_bounds = array<i64: 2, 640>}, {pipeline_mode = #tpu.pipeline_mode<synchronous>, transform_indices = @transform_3, window_bounds = array<i64: 640, 384>}, {pipeline_mode = #tpu.pipeline_mode<synchronous>, transform_indices = @transform_4, window_bounds = array<i64: 2, 384>}, {pipeline_mode = #tpu.pipeline_mode<synchronous>, transform_indices = @transform_5, window_bounds = array<i64: 384, 128>}, {pipeline_mode = #tpu.pipeline_mode<synchronous>, transform_indices = @transform_6, window_bounds = array<i64: 2, 128>}, {transform_indices = @transform_7, window_bounds = array<i64: 8, 128>}]} {
    %c0 = arith.constant 0 : index
    %c0_0 = arith.constant 0 : index
    %0 = vector.load %arg1[%c0, %c0_0] : memref<8x1024xf32, #tpu.memory_space<vmem>>, vector<8x1024xf32>
    %1 = arith.truncf %0 : vector<8x1024xf32> to vector<8x1024xbf16>
    %c0_1 = arith.constant 0 : index
    %c0_2 = arith.constant 0 : index
    %2 = vector.load %arg2[%c0_1, %c0_2] : memref<1024x640xi8, #tpu.memory_space<vmem>>, vector<1024x640xi8>
    %3 = arith.sitofp %2 : vector<1024x640xi8> to vector<1024x640xf32>
    %4 = arith.truncf %3 : vector<1024x640xf32> to vector<1024x640xbf16>
    %cst = arith.constant dense<0.000000e+00> : vector<8x640xf32>
    %5 = tpu.matmul %1, %4, %cst {dimension_numbers = #tpu.dot_dimension_numbers<[1], [0], [0], [1], [0, 0, 1, 1], [], []>} : vector<8x1024xbf16>, vector<1024x640xbf16>, vector<8x640xf32> -> vector<8x640xf32>
    %c0_3 = arith.constant 0 : index
    %c0_4 = arith.constant 0 : index
    %6 = vector.load %arg3[%c0_3, %c0_4] : memref<2x640xf32, #tpu.memory_space<vmem>>, vector<1x640xf32>
    %7 = vector.broadcast %6 : vector<1x640xf32> to vector<8x640xf32>
    %8 = arith.mulf %5, %7 : vector<8x640xf32>
    %c1 = arith.constant 1 : index
    %c0_5 = arith.constant 0 : index
    %9 = vector.load %arg3[%c1, %c0_5] : memref<2x640xf32, #tpu.memory_space<vmem>>, vector<1x640xf32>
    %10 = vector.broadcast %9 : vector<1x640xf32> to vector<8x640xf32>
    %11 = arith.addf %8, %10 : vector<8x640xf32>
    %cst_6 = arith.constant 0.000000e+00 : f32
    %12 = vector.broadcast %cst_6 : f32 to vector<8x640xf32>
    %13 = arith.maximumf %11, %12 : vector<8x640xf32>
    %c0_7 = arith.constant 0 : index
    %c0_8 = arith.constant 0 : index
    %14 = vector.load %arg4[%c0_7, %c0_8] : memref<640x384xi8, #tpu.memory_space<vmem>>, vector<640x384xi8>
    %15 = arith.sitofp %14 : vector<640x384xi8> to vector<640x384xf32>
    %16 = arith.truncf %15 : vector<640x384xf32> to vector<640x384xbf16>
    %17 = arith.truncf %13 : vector<8x640xf32> to vector<8x640xbf16>
    %cst_9 = arith.constant dense<0.000000e+00> : vector<8x384xf32>
    %18 = tpu.matmul %17, %16, %cst_9 {dimension_numbers = #tpu.dot_dimension_numbers<[1], [0], [0], [1], [0, 0, 1, 1], [], []>} : vector<8x640xbf16>, vector<640x384xbf16>, vector<8x384xf32> -> vector<8x384xf32>
    %c0_10 = arith.constant 0 : index
    %c0_11 = arith.constant 0 : index
    %19 = vector.load %arg5[%c0_10, %c0_11] : memref<2x384xf32, #tpu.memory_space<vmem>>, vector<1x384xf32>
    %20 = vector.broadcast %19 : vector<1x384xf32> to vector<8x384xf32>
    %21 = arith.mulf %18, %20 : vector<8x384xf32>
    %c1_12 = arith.constant 1 : index
    %c0_13 = arith.constant 0 : index
    %22 = vector.load %arg5[%c1_12, %c0_13] : memref<2x384xf32, #tpu.memory_space<vmem>>, vector<1x384xf32>
    %23 = vector.broadcast %22 : vector<1x384xf32> to vector<8x384xf32>
    %24 = arith.addf %21, %23 : vector<8x384xf32>
    %cst_14 = arith.constant 0.000000e+00 : f32
    %25 = vector.broadcast %cst_14 : f32 to vector<8x384xf32>
    %26 = arith.maximumf %24, %25 : vector<8x384xf32>
    %c0_15 = arith.constant 0 : index
    %c0_16 = arith.constant 0 : index
    %27 = vector.load %arg6[%c0_15, %c0_16] : memref<384x128xi8, #tpu.memory_space<vmem>>, vector<384x128xi8>
    %28 = arith.sitofp %27 : vector<384x128xi8> to vector<384x128xf32>
    %29 = arith.truncf %28 : vector<384x128xf32> to vector<384x128xbf16>
    %30 = arith.truncf %26 : vector<8x384xf32> to vector<8x384xbf16>
    %cst_17 = arith.constant dense<0.000000e+00> : vector<8x128xf32>
    %31 = tpu.matmul %30, %29, %cst_17 {dimension_numbers = #tpu.dot_dimension_numbers<[1], [0], [0], [1], [0, 0, 1, 1], [], []>} : vector<8x384xbf16>, vector<384x128xbf16>, vector<8x128xf32> -> vector<8x128xf32>
    %c0_18 = arith.constant 0 : index
    %c0_19 = arith.constant 0 : index
    %32 = vector.load %arg7[%c0_18, %c0_19] : memref<2x128xf32, #tpu.memory_space<vmem>>, vector<1x128xf32>
    %33 = vector.broadcast %32 : vector<1x128xf32> to vector<8x128xf32>
    %34 = arith.mulf %31, %33 : vector<8x128xf32>
    %c1_20 = arith.constant 1 : index
    %c0_21 = arith.constant 0 : index
    %35 = vector.load %arg7[%c1_20, %c0_21] : memref<2x128xf32, #tpu.memory_space<vmem>>, vector<1x128xf32>
    %36 = vector.broadcast %35 : vector<1x128xf32> to vector<8x128xf32>
    %37 = arith.addf %34, %36 : vector<8x128xf32>
    %c0_22 = arith.constant 0 : index
    %c0_23 = arith.constant 0 : index
    %38 = vector.load %arg8[%c0_22, %c0_23] : memref<8x128xf32, #tpu.memory_space<vmem>>, vector<8x128xf32>
    tpu.vector_store %arg8[%c0_22, %c0_23], %37 {strides = array<i32>} : memref<8x128xf32, #tpu.memory_space<vmem>>, vector<8x128xf32>,
    return
  }
  func.func @transform_0(%arg0: i32) -> (i32, i32) {
    %c0_i32 = arith.constant 0 : i32
    %c0_i32_0 = arith.constant 0 : i32
    return %arg0, %c0_i32 : i32, i32
  }
  func.func @transform_1(%arg0: i32) -> (i32, i32) {
    %c0_i32 = arith.constant 0 : i32
    %c0_i32_0 = arith.constant 0 : i32
    %c0_i32_1 = arith.constant 0 : i32
    return %c0_i32, %c0_i32_0 : i32, i32
  }
  func.func @transform_2(%arg0: i32) -> (i32, i32) {
    %c0_i32 = arith.constant 0 : i32
    %c0_i32_0 = arith.constant 0 : i32
    %c0_i32_1 = arith.constant 0 : i32
    return %c0_i32, %c0_i32_0 : i32, i32
  }
  func.func @transform_3(%arg0: i32) -> (i32, i32) {
    %c0_i32 = arith.constant 0 : i32
    %c0_i32_0 = arith.constant 0 : i32
    %c0_i32_1 = arith.constant 0 : i32
    return %c0_i32, %c0_i32_0 : i32, i32
  }
  func.func @transform_4(%arg0: i32) -> (i32, i32) {
    %c0_i32 = arith.constant 0 : i32
    %c0_i32_0 = arith.constant 0 : i32
    %c0_i32_1 = arith.constant 0 : i32
    return %c0_i32, %c0_i32_0 : i32, i32
  }
  func.func @transform_5(%arg0: i32) -> (i32, i32) {
    %c0_i32 = arith.constant 0 : i32
    %c0_i32_0 = arith.constant 0 : i32
    %c0_i32_1 = arith.constant 0 : i32
    return %c0_i32, %c0_i32_0 : i32, i32
  }
  func.func @transform_6(%arg0: i32) -> (i32, i32) {
    %c0_i32 = arith.constant 0 : i32
    %c0_i32_0 = arith.constant 0 : i32
    %c0_i32_1 = arith.constant 0 : i32
    return %c0_i32, %c0_i32_0 : i32, i32
  }
  func.func @transform_7(%arg0: i32) -> (i32, i32) {
    %c0_i32 = arith.constant 0 : i32
    %c0_i32_0 = arith.constant 0 : i32
    return %arg0, %c0_i32 : i32, i32
  }
}

</mosaic_0001>

<llo_original>
// kernel: tpu_custom_call.1
$region0: #{tpu_custom_call.1}
  #allocation0 [shape = 'u32[]', space=smem, size = 0x4, offset = 0x4, fixed_abs, tag = 'smem constant byte address 0x4 - core index']
  #allocation1 [shape = 'u32[144,128]{1,0:T(1,128)}', space=vmem, size = 0x12000, scoped, tag = 'internal scratch']
  %s0 = inlined_call_operand.hbm [shape: f32[8,1024], index: 0, kind: input, shape index: {}]
  %s1 = inlined_call_operand.hbm [shape: s8[1024,640], index: 1, kind: input, shape index: {}]
  %s2 = inlined_call_operand.hbm [shape: f32[2,640], index: 2, kind: input, shape index: {}]
  %s3 = inlined_call_operand.hbm [shape: s8[640,384], index: 3, kind: input, shape index: {}]
  %s4 = inlined_call_operand.vmem [shape: f32[2,384], index: 4, kind: input, shape index: {}]
  %s5 = inlined_call_operand.hbm [shape: s8[384,128], index: 5, kind: input, shape index: {}]
  %s6 = inlined_call_operand.vmem [shape: f32[2,128], index: 6, kind: input, shape index: {}]
  %s7 = inlined_call_operand.hbm [shape: f32[8,128], index: 7, kind: output, shape index: {}]
  %s8 = sld [smem:[#allocation0]]
  $region58: #{tpu_custom_call.1} parent=0
    _
  %s10 = ssub.s32 1, %s8
  %s11 = scalar_select 0, %s10, %s8
  $region1: #{tpu_custom_call.1} parent=0
    #allocation2 [shape = 'u8[32768]{0}', space=vmem, size = 0x8000, scoped, tag = 'input window, operand 0, single buffered']
    #allocation3 [shape = 's32[1]{0}', space=sflag, size = 0x4, scoped, tag = 'scoped memory for tpu_custom_call.1']
    #allocation4 [shape = 's32[1]{0}', space=sflag, size = 0x4, scoped, tag = 'scoped memory for tpu_custom_call.1']
    #allocation5 [shape = 'u8[655360]{0}', space=vmem, size = 0xa0000, scoped, tag = 'input window, operand 1, single buffered']
    #allocation6 [shape = 's32[1]{0}', space=sflag, size = 0x4, scoped, tag = 'scoped memory for tpu_custom_call.1']
    #allocation7 [shape = 'u8[5120]{0}', space=vmem, size = 0x1400, scoped, tag = 'input window, operand 2, single buffered']
    #allocation8 [shape = 'u8[245760]{0}', space=vmem, size = 0x3c000, scoped, tag = 'input window, operand 3, single buffered']
    #allocation9 [shape = 's32[1]{0}', space=sflag, size = 0x4, scoped, tag = 'scoped memory for tpu_custom_call.1']
    #allocation10 [shape = 'u8[49152]{0}', space=vmem, size = 0xc000, scoped, tag = 'input window, operand 5, single buffered']
    #allocation11 [shape = 'u8[4096]{0}', space=vmem, size = 0x1000, scoped, tag = 'output window, operand 0, single buffered']
    %12 = vsyncpa [#allocation3], 0
    %13 = vsyncpa [#allocation6], 0
    %14 = vsyncpa [#allocation9], 0
    %15 = vsyncpa [#allocation4], 0
    // Predicated region
    $region2: #{tpu_custom_call.1} parent=1 // pred_check
      _
    $region3: #{tpu_custom_call.1} parent=1 // pred_check_branch
      %17 = sbr.rel (0) target = $region5
    $region4: #{tpu_custom_call.1} parent=1 // pred_region
      %s19 = ssub.s32 1024, 1024
      %20 = vsyncadd [#allocation3], %s19
      %s22 = sshll.u32 [#allocation2], 4
      %s23 = int_to_ptr.vmem [resolvable:$true] %s22
      %25 = dma.hbm_to_vmem [thread:$0]  %s0, 1024, %s23, [#allocation3]
    $region5: #{tpu_custom_call.1} parent=1 // pred_fallthru
      _
    // Predicated region
    $region6: #{tpu_custom_call.1} parent=1 // pred_check
      _
    $region7: #{tpu_custom_call.1} parent=1 // pred_check_branch
      %27 = sbr.rel (0) target = $region9
    $region8: #{tpu_custom_call.1} parent=1 // pred_region
      %s29 = ssub.s32 20480, 20480
      %30 = vsyncadd [#allocation6], %s29
      %s31 = sshll.u32 [#allocation5], 4
      %s32 = int_to_ptr.vmem [resolvable:$true] %s31
      %37 = dma.hbm_to_vmem [thread:$0]  %s1, 20480, %s32, [#allocation6], 640, 640, 40
    $region9: #{tpu_custom_call.1} parent=1 // pred_fallthru
      _
    // Predicated region
    $region10: #{tpu_custom_call.1} parent=1 // pred_check
      _
    $region11: #{tpu_custom_call.1} parent=1 // pred_check_branch
      %39 = sbr.rel (0) target = $region13
    $region12: #{tpu_custom_call.1} parent=1 // pred_region
      %s41 = ssub.s32 160, 160
      %42 = vsyncadd [#allocation6], %s41
      %s44 = sshll.u32 [#allocation7], 4
      %s45 = int_to_ptr.vmem [resolvable:$true] %s44
      %47 = dma.hbm_to_vmem [thread:$0]  %s2, 160, %s45, [#allocation6]
    $region13: #{tpu_custom_call.1} parent=1 // pred_fallthru
      _
    // Predicated region
    $region14: #{tpu_custom_call.1} parent=1 // pred_check
      _
    $region15: #{tpu_custom_call.1} parent=1 // pred_check_branch
      %49 = sbr.rel (0) target = $region17
    $region16: #{tpu_custom_call.1} parent=1 // pred_region
      %s51 = ssub.s32 7680, 7680
      %52 = vsyncadd [#allocation9], %s51
      %s53 = sshll.u32 [#allocation8], 4
      %s54 = int_to_ptr.vmem [resolvable:$true] %s53
      %59 = dma.hbm_to_vmem [thread:$0]  %s3, 7680, %s54, [#allocation9], 384, 384, 24
    $region17: #{tpu_custom_call.1} parent=1 // pred_fallthru
      _
    // Predicated region
    $region18: #{tpu_custom_call.1} parent=1 // pred_check
      _
    $region19: #{tpu_custom_call.1} parent=1 // pred_check_branch
      %61 = sbr.rel (0) target = $region21
    $region20: #{tpu_custom_call.1} parent=1 // pred_region
      _
    $region21: #{tpu_custom_call.1} parent=1 // pred_fallthru
      _
    // Predicated region
    $region22: #{tpu_custom_call.1} parent=1 // pred_check
      _
    $region23: #{tpu_custom_call.1} parent=1 // pred_check_branch
      %63 = sbr.rel (0) target = $region25
    $region24: #{tpu_custom_call.1} parent=1 // pred_region
      %s65 = ssub.s32 1536, 1536
      %66 = vsyncadd [#allocation9], %s65
      %s67 = sshll.u32 [#allocation10], 4
      %s68 = int_to_ptr.vmem [resolvable:$true] %s67
      %73 = dma.hbm_to_vmem [thread:$0]  %s5, 1536, %s68, [#allocation9], 128, 128, 8
    $region25: #{tpu_custom_call.1} parent=1 // pred_fallthru
      _
    // Predicated region
    $region26: #{tpu_custom_call.1} parent=1 // pred_check
      _
    $region27: #{tpu_custom_call.1} parent=1 // pred_check_branch
      %75 = sbr.rel (0) target = $region29
    $region28: #{tpu_custom_call.1} parent=1 // pred_region
      _
    $region29: #{tpu_custom_call.1} parent=1 // pred_fallthru
      _
    // Predicated region
    $region30: #{tpu_custom_call.1} parent=1 // pred_check
      _
    $region31: #{tpu_custom_call.1} parent=1 // pred_check_branch
      %77 = sbr.rel (0) target = $region33
    $region32: #{tpu_custom_call.1} parent=1 // pred_region
      %78 = dma.done [#allocation3], 1024
    $region33: #{tpu_custom_call.1} parent=1 // pred_fallthru
      _
    // Predicated region
    $region34: #{tpu_custom_call.1} parent=1 // pred_check
      _
    $region35: #{tpu_custom_call.1} parent=1 // pred_check_branch
      %80 = sbr.rel (0) target = $region37
    $region36: #{tpu_custom_call.1} parent=1 // pred_region
      %81 = dma.done [#allocation6], 20480
    $region37: #{tpu_custom_call.1} parent=1 // pred_fallthru
      _
    // Predicated region
    $region38: #{tpu_custom_call.1} parent=1 // pred_check
      _
    $region39: #{tpu_custom_call.1} parent=1 // pred_check_branch
      %83 = sbr.rel (0) target = $region41
    $region40: #{tpu_custom_call.1} parent=1 // pred_region
      %84 = dma.done [#allocation6], 160
    $region41: #{tpu_custom_call.1} parent=1 // pred_fallthru
      _
    // Predicated region
    $region42: #{tpu_custom_call.1} parent=1 // pred_check
      _
    $region43: #{tpu_custom_call.1} parent=1 // pred_check_branch
      %86 = sbr.rel (0) target = $region45
    $region44: #{tpu_custom_call.1} parent=1 // pred_region
      %87 = dma.done [#allocation9], 7680
    $region45: #{tpu_custom_call.1} parent=1 // pred_fallthru
      _
    // Predicated region
    $region46: #{tpu_custom_call.1} parent=1 // pred_check
      _
    $region47: #{tpu_custom_call.1} parent=1 // pred_check_branch
      %89 = sbr.rel (0) target = $region49
    $region48: #{tpu_custom_call.1} parent=1 // pred_region
      %90 = dma.done [#allocation9], 1536
    $region49: #{tpu_custom_call.1} parent=1 // pred_fallthru
      _
    %v92 = vld [vmem:[#allocation2] sm:$0xff]
    %v93 = vld [vmem:[#allocation2 + $0x8] sm:$0xff]
    %v94 = vld [vmem:[#allocation2 + $0x10] sm:$0xff]
    %v95 = vld [vmem:[#allocation2 + $0x18] sm:$0xff]
    %v96 = vld [vmem:[#allocation2 + $0x20] sm:$0xff]
    %v97 = vld [vmem:[#allocation2 + $0x28] sm:$0xff]
    %v98 = vld [vmem:[#allocation2 + $0x30] sm:$0xff]
    %v99 = vld [vmem:[#allocation2 + $0x38] sm:$0xff]
    %v100 = vpack.c.bf16 %v92, %v92
    %v101 = vpack.c.bf16 %v93, %v93
    %v102 = vpack.c.bf16 %v94, %v94
    %v103 = vpack.c.bf16 %v95, %v95
    %v104 = vpack.c.bf16 %v96, %v96
    %v105 = vpack.c.bf16 %v97, %v97
    %v106 = vpack.c.bf16 %v98, %v98
    %v107 = vpack.c.bf16 %v99, %v99
    %v108 = vld [vmem:[#allocation5] sm:$0xff]
    %v109 = vld [vmem:[#allocation5 + $0x8] sm:$0xff]
    %v110 = vld [vmem:[#allocation5 + $0x10] sm:$0xff]
    %v111 = vld [vmem:[#allocation5 + $0x18] sm:$0xff]
    %v112 = vld [vmem:[#allocation5 + $0x20] sm:$0xff]
    %v113 = vld [vmem:[#allocation5 + $0x28] sm:$0xff]
    %v114 = vld [vmem:[#allocation5 + $0x30] sm:$0xff]
    %v115 = vld [vmem:[#allocation5 + $0x38] sm:$0xff]
    %v116 = vld [vmem:[#allocation5 + $0x40] sm:$0xff]
    %v117 = vld [vmem:[#allocation5 + $0x48] sm:$0xff]
    %v118 = vld [vmem:[#allocation5 + $0x50] sm:$0xff]
    %v119 = vld [vmem:[#allocation5 + $0x58] sm:$0xff]
    %v120 = vld [vmem:[#allocation5 + $0x60] sm:$0xff]
    %v121 = vld [vmem:[#allocation5 + $0x68] sm:$0xff]
    %v122 = vld [vmem:[#allocation5 + $0x70] sm:$0xff]
    %v123 = vld [vmem:[#allocation5 + $0x78] sm:$0xff]
    %v124 = vld [vmem:[#allocation5 + $0x80] sm:$0xff]
    %v125 = vld [vmem:[#allocation5 + $0x88] sm:$0xff]
    %v126 = vld [vmem:[#allocation5 + $0x90] sm:$0xff]
    %v127 = vld [vmem:[#allocation5 + $0x98] sm:$0xff]
    %v128 = vld [vmem:[#allocation5 + $0xa0] sm:$0xff]
    %v129 = vld [vmem:[#allocation5 + $0xa8] sm:$0xff]
    %v130 = vld [vmem:[#allocation5 + $0xb0] sm:$0xff]
    %v131 = vld [vmem:[#allocation5 + $0xb8] sm:$0xff]
    %v132 = vld [vmem:[#allocation5 + $0xc0] sm:$0xff]
    %v133 = vld [vmem:[#allocation5 + $0xc8] sm:$0xff]
    %v134 = vld [vmem:[#allocation5 + $0xd0] sm:$0xff]
    %v135 = vld [vmem:[#allocation5 + $0xd8] sm:$0xff]
    %v136 = vld [vmem:[#allocation5 + $0xe0] sm:$0xff]
    %v137 = vld [vmem:[#allocation5 + $0xe8] sm:$0xff]
    %v138 = vld [vmem:[#allocation5 + $0xf0] sm:$0xff]
    %v139 = vld [vmem:[#allocation5 + $0xf8] sm:$0xff]
    %v140 = vld [vmem:[#allocation5 + $0x100] sm:$0xff]
    %v141 = vld [vmem:[#allocation5 + $0x108] sm:$0xff]
    %v142 = vld [vmem:[#allocation5 + $0x110] sm:$0xff]
    %v143 = vld [vmem:[#allocation5 + $0x118] sm:$0xff]
    %v144 = vld [vmem:[#allocation5 + $0x120] sm:$0xff]
    %v145 = vld [vmem:[#allocation5 + $0x128] sm:$0xff]
    %v146 = vld [vmem:[#allocation5 + $0x130] sm:$0xff]
    %v147 = vld [vmem:[#allocation5 + $0x138] sm:$0xff]
    %v148 = vld [vmem:[#allocation5 + $0x140] sm:$0xff]
    %v149 = vld [vmem:[#allocation5 + $0x148] sm:$0xff]
    %v150 = vld [vmem:[#allocation5 + $0x150] sm:$0xff]
    %v151 = vld [vmem:[#allocation5 + $0x158] sm:$0xff]
    %v152 = vld [vmem:[#allocation5 + $0x160] sm:$0xff]
    %v153 = vld [vmem:[#allocation5 + $0x168] sm:$0xff]
    %v154 = vld [vmem:[#allocation5 + $0x170] sm:$0xff]
    %v155 = vld [vmem:[#allocation5 + $0x178] sm:$0xff]
    %v156 = vld [vmem:[#allocation5 + $0x180] sm:$0xff]
    %v157 = vld [vmem:[#allocation5 + $0x188] sm:$0xff]
    %v158 = vld [vmem:[#allocation5 + $0x190] sm:$0xff]
    %v159 = vld [vmem:[#allocation5 + $0x198] sm:$0xff]
    %v160 = vld [vmem:[#allocation5 + $0x1a0] sm:$0xff]
    %v161 = vld [vmem:[#allocation5 + $0x1a8] sm:$0xff]
    %v162 = vld [vmem:[#allocation5 + $0x1b0] sm:$0xff]
    %v163 = vld [vmem:[#allocation5 + $0x1b8] sm:$0xff]
    %v164 = vld [vmem:[#allocation5 + $0x1c0] sm:$0xff]
    %v165 = vld [vmem:[#allocation5 + $0x1c8] sm:$0xff]
    %v166 = vld [vmem:[#allocation5 + $0x1d0] sm:$0xff]
    %v167 = vld [vmem:[#allocation5 + $0x1d8] sm:$0xff]
    %v168 = vld [vmem:[#allocation5 + $0x1e0] sm:$0xff]
    %v169 = vld [vmem:[#allocation5 + $0x1e8] sm:$0xff]
    %v170 = vld [vmem:[#allocation5 + $0x1f0] sm:$0xff]
    %v171 = vld [vmem:[#allocation5 + $0x1f8] sm:$0xff]
    %v172 = vld [vmem:[#allocation5 + $0x200] sm:$0xff]
    %v173 = vld [vmem:[#allocation5 + $0x208] sm:$0xff]
    %v174 = vld [vmem:[#allocation5 + $0x210] sm:$0xff]
    %v175 = vld [vmem:[#allocation5 + $0x218] sm:$0xff]
    %v176 = vld [vmem:[#allocation5 + $0x220] sm:$0xff]
    %v177 = vld [vmem:[#allocation5 + $0x228] sm:$0xff]
    %v178 = vld [vmem:[#allocation5 + $0x230] sm:$0xff]
    %v179 = vld [vmem:[#allocation5 + $0x238] sm:$0xff]
    %v180 = vld [vmem:[#allocation5 + $0x240] sm:$0xff]
    %v181 = vld [vmem:[#allocation5 + $0x248] sm:$0xff]
    %v182 = vld [vmem:[#allocation5 + $0x250] sm:$0xff]
    %v183 = vld [vmem:[#allocation5 + $0x258] sm:$0xff]
    %v184 = vld [vmem:[#allocation5 + $0x260] sm:$0xff]
    %v185 = vld [vmem:[#allocation5 + $0x268] sm:$0xff]
    %v186 = vld [vmem:[#allocation5 + $0x270] sm:$0xff]
    %v187 = vld [vmem:[#allocation5 + $0x278] sm:$0xff]
    %v188 = vld [vmem:[#allocation5 + $0x280] sm:$0xff]
    %v189 = vld [vmem:[#allocation5 + $0x288] sm:$0xff]
    %v190 = vld [vmem:[#allocation5 + $0x290] sm:$0xff]
    %v191 = vld [vmem:[#allocation5 + $0x298] sm:$0xff]
    %v192 = vld [vmem:[#allocation5 + $0x2a0] sm:$0xff]
    %v193 = vld [vmem:[#allocation5 + $0x2a8] sm:$0xff]
    %v194 = vld [vmem:[#allocation5 + $0x2b0] sm:$0xff]
    %v195 = vld [vmem:[#allocation5 + $0x2b8] sm:$0xff]
    %v196 = vld [vmem:[#allocation5 + $0x2c0] sm:$0xff]
    %v197 = vld [vmem:[#allocation5 + $0x2c8] sm:$0xff]
    %v198 = vld [vmem:[#allocation5 + $0x2d0] sm:$0xff]
    %v199 = vld [vmem:[#allocation5 + $0x2d8] sm:$0xff]
    %v200 = vld [vmem:[#allocation5 + $0x2e0] sm:$0xff]
    %v201 = vld [vmem:[#allocation5 + $0x2e8] sm:$0xff]
    %v202 = vld [vmem:[#allocation5 + $0x2f0] sm:$0xff]
    %v203 = vld [vmem:[#allocation5 + $0x2f8] sm:$0xff]
    %v204 = vld [vmem:[#allocation5 + $0x300] sm:$0xff]
    %v205 = vld [vmem:[#allocation5 + $0x308] sm:$0xff]
    %v206 = vld [vmem:[#allocation5 + $0x310] sm:$0xff]
    %v207 = vld [vmem:[#allocation5 + $0x318] sm:$0xff]
    %v208 = vld [vmem:[#allocation5 + $0x320] sm:$0xff]
    %v209 = vld [vmem:[#allocation5 + $0x328] sm:$0xff]
    %v210 = vld [vmem:[#allocation5 + $0x330] sm:$0xff]
    %v211 = vld [vmem:[#allocation5 + $0x338] sm:$0xff]
    %v212 = vld [vmem:[#allocation5 + $0x340] sm:$0xff]
    %v213 = vld [vmem:[#allocation5 + $0x348] sm:$0xff]
    %v214 = vld [vmem:[#allocation5 + $0x350] sm:$0xff]
    %v215 = vld [vmem:[#allocation5 + $0x358] sm:$0xff]
    %v216 = vld [vmem:[#allocation5 + $0x360] sm:$0xff]
    %v217 = vld [vmem:[#allocation5 + $0x368] sm:$0xff]
    %v218 = vld [vmem:[#allocation5 + $0x370] sm:$0xff]
    %v219 = vld [vmem:[#allocation5 + $0x378] sm:$0xff]
    %v220 = vld [vmem:[#allocation5 + $0x380] sm:$0xff]
    %v221 = vld [vmem:[#allocation5 + $0x388] sm:$0xff]
    %v222 = vld [vmem:[#allocation5 + $0x390] sm:$0xff]
    %v223 = vld [vmem:[#allocation5 + $0x398] sm:$0xff]
    %v224 = vld [vmem:[#allocation5 + $0x3a0] sm:$0xff]
    %v225 = vld [vmem:[#allocation5 + $0x3a8] sm:$0xff]
    %v226 = vld [vmem:[#allocation5 + $0x3b0] sm:$0xff]
    %v227 = vld [vmem:[#allocation5 + $0x3b8] sm:$0xff]
    %v228 = vld [vmem:[#allocation5 + $0x3c0] sm:$0xff]
    %v229 = vld [vmem:[#allocation5 + $0x3c8] sm:$0xff]
    %v230 = vld [vmem:[#allocation5 + $0x3d0] sm:$0xff]
    %v231 = vld [vmem:[#allocation5 + $0x3d8] sm:$0xff]
    %v232 = vld [vmem:[#allocation5 + $0x3e0] sm:$0xff]
    %v233 = vld [vmem:[#allocation5 + $0x3e8] sm:$0xff]
    %v234 = vld [vmem:[#allocation5 + $0x3f0] sm:$0xff]
    %v235 = vld [vmem:[#allocation5 + $0x3f8] sm:$0xff]
    %v236 = vld [vmem:[#allocation5 + $0x400] sm:$0xff]
    %v237 = vld [vmem:[#allocation5 + $0x408] sm:$0xff]
    %v238 = vld [vmem:[#allocation5 + $0x410] sm:$0xff]
    %v239 = vld [vmem:[#allocation5 + $0x418] sm:$0xff]
    %v240 = vld [vmem:[#allocation5 + $0x420] sm:$0xff]
    %v241 = vld [vmem:[#allocation5 + $0x428] sm:$0xff]
    %v242 = vld [vmem:[#allocation5 + $0x430] sm:$0xff]
    %v243 = vld [vmem:[#allocation5 + $0x438] sm:$0xff]
    %v244 = vld [vmem:[#allocation5 + $0x440] sm:$0xff]
    %v245 = vld [vmem:[#allocation5 + $0x448] sm:$0xff]
    %v246 = vld [vmem:[#allocation5 + $0x450] sm:$0xff]
    %v247 = vld [vmem:[#allocation5 + $0x458] sm:$0xff]
    %v248 = vld [vmem:[#allocation5 + $0x460] sm:$0xff]
    %v249 = vld [vmem:[#allocation5 + $0x468] sm:$0xff]
    %v250 = vld [vmem:[#allocation5 + $0x470] sm:$0xff]
    %v251 = vld [vmem:[#allocation5 + $0x478] sm:$0xff]
    %v252 = vld [vmem:[#allocation5 + $0x480] sm:$0xff]
    %v253 = vld [vmem:[#allocation5 + $0x488] sm:$0xff]
    %v254 = vld [vmem:[#allocation5 + $0x490] sm:$0xff]
    %v255 = vld [vmem:[#allocation5 + $0x498] sm:$0xff]
    %v256 = vld [vmem:[#allocation5 + $0x4a0] sm:$0xff]
    %v257 = vld [vmem:[#allocation5 + $0x4a8] sm:$0xff]
    %v258 = vld [vmem:[#allocation5 + $0x4b0] sm:$0xff]
    %v259 = vld [vmem:[#allocation5 + $0x4b8] sm:$0xff]
    %v260 = vld [vmem:[#allocation5 + $0x4c0] sm:$0xff]
    %v261 = vld [vmem:[#allocation5 + $0x4c8] sm:$0xff]
    %v262 = vld [vmem:[#allocation5 + $0x4d0] sm:$0xff]
    %v263 = vld [vmem:[#allocation5 + $0x4d8] sm:$0xff]
    %v264 = vld [vmem:[#allocation5 + $0x4e0] sm:$0xff]
    %v265 = vld [vmem:[#allocation5 + $0x4e8] sm:$0xff]
    %v266 = vld [vmem:[#allocation5 + $0x4f0] sm:$0xff]
    %v267 = vld [vmem:[#allocation5 + $0x4f8] sm:$0xff]
    %v268 = vunpack.c.l.s8.bf16 %v108
    %v269 = vunpack.c.l.s8.bf16 %v109
    %v270 = vunpack.c.l.s8.bf16 %v110
    %v271 = vunpack.c.l.s8.bf16 %v111
    %v272 = vunpack.c.l.s8.bf16 %v112
    %v273 = vunpack.c.h.s8.bf16 %v108
    %v274 = vunpack.c.h.s8.bf16 %v109
    %v275 = vunpack.c.h.s8.bf16 %v110
    %v276 = vunpack.c.h.s8.bf16 %v111
    %v277 = vunpack.c.h.s8.bf16 %v112
    %v278 = vunpack.c.l.s8.bf16 %v113
    %v279 = vunpack.c.l.s8.bf16 %v114
    %v280 = vunpack.c.l.s8.bf16 %v115
    %v281 = vunpack.c.l.s8.bf16 %v116
    %v282 = vunpack.c.l.s8.bf16 %v117
    %v283 = vunpack.c.h.s8.bf16 %v113
    %v284 = vunpack.c.h.s8.bf16 %v114
    %v285 = vunpack.c.h.s8.bf16 %v115
    %v286 = vunpack.c.h.s8.bf16 %v116
    %v287 = vunpack.c.h.s8.bf16 %v117
    %v288 = vunpack.c.l.s8.bf16 %v118
    %v289 = vunpack.c.l.s8.bf16 %v119
    %v290 = vunpack.c.l.s8.bf16 %v120
    %v291 = vunpack.c.l.s8.bf16 %v121
    %v292 = vunpack.c.l.s8.bf16 %v122
    %v293 = vunpack.c.h.s8.bf16 %v118
    %v294 = vunpack.c.h.s8.bf16 %v119
    %v295 = vunpack.c.h.s8.bf16 %v120
    %v296 = vunpack.c.h.s8.bf16 %v121
    %v297 = vunpack.c.h.s8.bf16 %v122
    %v298 = vunpack.c.l.s8.bf16 %v123
    %v299 = vunpack.c.l.s8.bf16 %v124
    %v300 = vunpack.c.l.s8.bf16 %v125
    %v301 = vunpack.c.l.s8.bf16 %v126
    %v302 = vunpack.c.l.s8.bf16 %v127
    %v303 = vunpack.c.h.s8.bf16 %v123
    %v304 = vunpack.c.h.s8.bf16 %v124
    %v305 = vunpack.c.h.s8.bf16 %v125
    %v306 = vunpack.c.h.s8.bf16 %v126
    %v307 = vunpack.c.h.s8.bf16 %v127
    %v308 = vunpack.c.l.s8.bf16 %v128
    %v309 = vunpack.c.l.s8.bf16 %v129
    %v310 = vunpack.c.l.s8.bf16 %v130
    %v311 = vunpack.c.l.s8.bf16 %v131
    %v312 = vunpack.c.l.s8.bf16 %v132
    %v313 = vunpack.c.h.s8.bf16 %v128
    %v314 = vunpack.c.h.s8.bf16 %v129
    %v315 = vunpack.c.h.s8.bf16 %v130
    %v316 = vunpack.c.h.s8.bf16 %v131
    %v317 = vunpack.c.h.s8.bf16 %v132
    %v318 = vunpack.c.l.s8.bf16 %v133
    %v319 = vunpack.c.l.s8.bf16 %v134
    %v320 = vunpack.c.l.s8.bf16 %v135
    %v321 = vunpack.c.l.s8.bf16 %v136
    %v322 = vunpack.c.l.s8.bf16 %v137
    %v323 = vunpack.c.h.s8.bf16 %v133
    %v324 = vunpack.c.h.s8.bf16 %v134
    %v325 = vunpack.c.h.s8.bf16 %v135
    %v326 = vunpack.c.h.s8.bf16 %v136
    %v327 = vunpack.c.h.s8.bf16 %v137
    %v328 = vunpack.c.l.s8.bf16 %v138
    %v329 = vunpack.c.l.s8.bf16 %v139
    %v330 = vunpack.c.l.s8.bf16 %v140
    %v331 = vunpack.c.l.s8.bf16 %v141
    %v332 = vunpack.c.l.s8.bf16 %v142
    %v333 = vunpack.c.h.s8.bf16 %v138
    %v334 = vunpack.c.h.s8.bf16 %v139
    %v335 = vunpack.c.h.s8.bf16 %v140
    %v336 = vunpack.c.h.s8.bf16 %v141
    %v337 = vunpack.c.h.s8.bf16 %v142
    %v338 = vunpack.c.l.s8.bf16 %v143
    %v339 = vunpack.c.l.s8.bf16 %v144
    %v340 = vunpack.c.l.s8.bf16 %v145
    %v341 = vunpack.c.l.s8.bf16 %v146
    %v342 = vunpack.c.l.s8.bf16 %v147
    %v343 = vunpack.c.h.s8.bf16 %v143
    %v344 = vunpack.c.h.s8.bf16 %v144
    %v345 = vunpack.c.h.s8.bf16 %v145
    %v346 = vunpack.c.h.s8.bf16 %v146
    %v347 = vunpack.c.h.s8.bf16 %v147
    %v348 = vunpack.c.l.s8.bf16 %v148
    %v349 = vunpack.c.l.s8.bf16 %v149
    %v350 = vunpack.c.l.s8.bf16 %v150
    %v351 = vunpack.c.l.s8.bf16 %v151
    %v352 = vunpack.c.l.s8.bf16 %v152
    %v353 = vunpack.c.h.s8.bf16 %v148
    %v354 = vunpack.c.h.s8.bf16 %v149
    %v355 = vunpack.c.h.s8.bf16 %v150
    %v356 = vunpack.c.h.s8.bf16 %v151
    %v357 = vunpack.c.h.s8.bf16 %v152
    %v358 = vunpack.c.l.s8.bf16 %v153
    %v359 = vunpack.c.l.s8.bf16 %v154
    %v360 = vunpack.c.l.s8.bf16 %v155
    %v361 = vunpack.c.l.s8.bf16 %v156
    %v362 = vunpack.c.l.s8.bf16 %v157
    %v363 = vunpack.c.h.s8.bf16 %v153
    %v364 = vunpack.c.h.s8.bf16 %v154
    %v365 = vunpack.c.h.s8.bf16 %v155
    %v366 = vunpack.c.h.s8.bf16 %v156
    %v367 = vunpack.c.h.s8.bf16 %v157
    %v368 = vunpack.c.l.s8.bf16 %v158
    %v369 = vunpack.c.l.s8.bf16 %v159
    %v370 = vunpack.c.l.s8.bf16 %v160
    %v371 = vunpack.c.l.s8.bf16 %v161
    %v372 = vunpack.c.l.s8.bf16 %v162
    %v373 = vunpack.c.h.s8.bf16 %v158
    %v374 = vunpack.c.h.s8.bf16 %v159
    %v375 = vunpack.c.h.s8.bf16 %v160
    %v376 = vunpack.c.h.s8.bf16 %v161
    %v377 = vunpack.c.h.s8.bf16 %v162
    %v378 = vunpack.c.l.s8.bf16 %v163
    %v379 = vunpack.c.l.s8.bf16 %v164
    %v380 = vunpack.c.l.s8.bf16 %v165
    %v381 = vunpack.c.l.s8.bf16 %v166
    %v382 = vunpack.c.l.s8.bf16 %v167
    %v383 = vunpack.c.h.s8.bf16 %v163
    %v384 = vunpack.c.h.s8.bf16 %v164
    %v385 = vunpack.c.h.s8.bf16 %v165
    %v386 = vunpack.c.h.s8.bf16 %v166
    %v387 = vunpack.c.h.s8.bf16 %v167
    %v388 = vunpack.c.l.s8.bf16 %v168
    %v389 = vunpack.c.l.s8.bf16 %v169
    %v390 = vunpack.c.l.s8.bf16 %v170
    %v391 = vunpack.c.l.s8.bf16 %v171
    %v392 = vunpack.c.l.s8.bf16 %v172
    %v393 = vunpack.c.h.s8.bf16 %v168
    %v394 = vunpack.c.h.s8.bf16 %v169
    %v395 = vunpack.c.h.s8.bf16 %v170
    %v396 = vunpack.c.h.s8.bf16 %v171
    %v397 = vunpack.c.h.s8.bf16 %v172
    %v398 = vunpack.c.l.s8.bf16 %v173
    %v399 = vunpack.c.l.s8.bf16 %v174
    %v400 = vunpack.c.l.s8.bf16 %v175
    %v401 = vunpack.c.l.s8.bf16 %v176
    %v402 = vunpack.c.l.s8.bf16 %v177
    %v403 = vunpack.c.h.s8.bf16 %v173
    %v404 = vunpack.c.h.s8.bf16 %v174
    %v405 = vunpack.c.h.s8.bf16 %v175
    %v406 = vunpack.c.h.s8.bf16 %v176
    %v407 = vunpack.c.h.s8.bf16 %v177
    %v408 = vunpack.c.l.s8.bf16 %v178
    %v409 = vunpack.c.l.s8.bf16 %v179
    %v410 = vunpack.c.l.s8.bf16 %v180
    %v411 = vunpack.c.l.s8.bf16 %v181
    %v412 = vunpack.c.l.s8.bf16 %v182
    %v413 = vunpack.c.h.s8.bf16 %v178
    %v414 = vunpack.c.h.s8.bf16 %v179
    %v415 = vunpack.c.h.s8.bf16 %v180
    %v416 = vunpack.c.h.s8.bf16 %v181
    %v417 = vunpack.c.h.s8.bf16 %v182
    %v418 = vunpack.c.l.s8.bf16 %v183
    %v419 = vunpack.c.l.s8.bf16 %v184
    %v420 = vunpack.c.l.s8.bf16 %v185
    %v421 = vunpack.c.l.s8.bf16 %v186
    %v422 = vunpack.c.l.s8.bf16 %v187
    %v423 = vunpack.c.h.s8.bf16 %v183
    %v424 = vunpack.c.h.s8.bf16 %v184
    %v425 = vunpack.c.h.s8.bf16 %v185
    %v426 = vunpack.c.h.s8.bf16 %v186
    %v427 = vunpack.c.h.s8.bf16 %v187
    %v428 = vunpack.c.l.s8.bf16 %v188
    %v429 = vunpack.c.l.s8.bf16 %v189
    %v430 = vunpack.c.l.s8.bf16 %v190
    %v431 = vunpack.c.l.s8.bf16 %v191
    %v432 = vunpack.c.l.s8.bf16 %v192
    %v433 = vunpack.c.h.s8.bf16 %v188
    %v434 = vunpack.c.h.s8.bf16 %v189
    %v435 = vunpack.c.h.s8.bf16 %v190
    %v436 = vunpack.c.h.s8.bf16 %v191
    %v437 = vunpack.c.h.s8.bf16 %v192
    %v438 = vunpack.c.l.s8.bf16 %v193
    %v439 = vunpack.c.l.s8.bf16 %v194
    %v440 = vunpack.c.l.s8.bf16 %v195
    %v441 = vunpack.c.l.s8.bf16 %v196
    %v442 = vunpack.c.l.s8.bf16 %v197
    %v443 = vunpack.c.h.s8.bf16 %v193
    %v444 = vunpack.c.h.s8.bf16 %v194
    %v445 = vunpack.c.h.s8.bf16 %v195
    %v446 = vunpack.c.h.s8.bf16 %v196
    %v447 = vunpack.c.h.s8.bf16 %v197
    %v448 = vunpack.c.l.s8.bf16 %v198
    %v449 = vunpack.c.l.s8.bf16 %v199
    %v450 = vunpack.c.l.s8.bf16 %v200
    %v451 = vunpack.c.l.s8.bf16 %v201
    %v452 = vunpack.c.l.s8.bf16 %v202
    %v453 = vunpack.c.h.s8.bf16 %v198
    %v454 = vunpack.c.h.s8.bf16 %v199
    %v455 = vunpack.c.h.s8.bf16 %v200
    %v456 = vunpack.c.h.s8.bf16 %v201
    %v457 = vunpack.c.h.s8.bf16 %v202
    %v458 = vunpack.c.l.s8.bf16 %v203
    %v459 = vunpack.c.l.s8.bf16 %v204
    %v460 = vunpack.c.l.s8.bf16 %v205
    %v461 = vunpack.c.l.s8.bf16 %v206
    %v462 = vunpack.c.l.s8.bf16 %v207
    %v463 = vunpack.c.h.s8.bf16 %v203
    %v464 = vunpack.c.h.s8.bf16 %v204
    %v465 = vunpack.c.h.s8.bf16 %v205
    %v466 = vunpack.c.h.s8.bf16 %v206
    %v467 = vunpack.c.h.s8.bf16 %v207
    %v468 = vunpack.c.l.s8.bf16 %v208
    %v469 = vunpack.c.l.s8.bf16 %v209
    %v470 = vunpack.c.l.s8.bf16 %v210
    %v471 = vunpack.c.l.s8.bf16 %v211
    %v472 = vunpack.c.l.s8.bf16 %v212
    %v473 = vunpack.c.h.s8.bf16 %v208
    %v474 = vunpack.c.h.s8.bf16 %v209
    %v475 = vunpack.c.h.s8.bf16 %v210
    %v476 = vunpack.c.h.s8.bf16 %v211
    %v477 = vunpack.c.h.s8.bf16 %v212
    %v478 = vunpack.c.l.s8.bf16 %v213
    %v479 = vunpack.c.l.s8.bf16 %v214
    %v480 = vunpack.c.l.s8.bf16 %v215
    %v481 = vunpack.c.l.s8.bf16 %v216
    %v482 = vunpack.c.l.s8.bf16 %v217
    %v483 = vunpack.c.h.s8.bf16 %v213
    %v484 = vunpack.c.h.s8.bf16 %v214
    %v485 = vunpack.c.h.s8.bf16 %v215
    %v486 = vunpack.c.h.s8.bf16 %v216
    %v487 = vunpack.c.h.s8.bf16 %v217
    %v488 = vunpack.c.l.s8.bf16 %v218
    %v489 = vunpack.c.l.s8.bf16 %v219
    %v490 = vunpack.c.l.s8.bf16 %v220
    %v491 = vunpack.c.l.s8.bf16 %v221
    %v492 = vunpack.c.l.s8.bf16 %v222
    %v493 = vunpack.c.h.s8.bf16 %v218
    %v494 = vunpack.c.h.s8.bf16 %v219
    %v495 = vunpack.c.h.s8.bf16 %v220
    %v496 = vunpack.c.h.s8.bf16 %v221
    %v497 = vunpack.c.h.s8.bf16 %v222
    %v498 = vunpack.c.l.s8.bf16 %v223
    %v499 = vunpack.c.l.s8.bf16 %v224
    %v500 = vunpack.c.l.s8.bf16 %v225
    %v501 = vunpack.c.l.s8.bf16 %v226
    %v502 = vunpack.c.l.s8.bf16 %v227
    %v503 = vunpack.c.h.s8.bf16 %v223
    %v504 = vunpack.c.h.s8.bf16 %v224
    %v505 = vunpack.c.h.s8.bf16 %v225
    %v506 = vunpack.c.h.s8.bf16 %v226
    %v507 = vunpack.c.h.s8.bf16 %v227
    %v508 = vunpack.c.l.s8.bf16 %v228
    %v509 = vunpack.c.l.s8.bf16 %v229
    %v510 = vunpack.c.l.s8.bf16 %v230
    %v511 = vunpack.c.l.s8.bf16 %v231
    %v512 = vunpack.c.l.s8.bf16 %v232
    %v513 = vunpack.c.h.s8.bf16 %v228
    %v514 = vunpack.c.h.s8.bf16 %v229
    %v515 = vunpack.c.h.s8.bf16 %v230
    %v516 = vunpack.c.h.s8.bf16 %v231
    %v517 = vunpack.c.h.s8.bf16 %v232
    %v518 = vunpack.c.l.s8.bf16 %v233
    %v519 = vunpack.c.l.s8.bf16 %v234
    %v520 = vunpack.c.l.s8.bf16 %v235
    %v521 = vunpack.c.l.s8.bf16 %v236
    %v522 = vunpack.c.l.s8.bf16 %v237
    %v523 = vunpack.c.h.s8.bf16 %v233
    %v524 = vunpack.c.h.s8.bf16 %v234
    %v525 = vunpack.c.h.s8.bf16 %v235
    %v526 = vunpack.c.h.s8.bf16 %v236
    %v527 = vunpack.c.h.s8.bf16 %v237
    %v528 = vunpack.c.l.s8.bf16 %v238
    %v529 = vunpack.c.l.s8.bf16 %v239
    %v530 = vunpack.c.l.s8.bf16 %v240
    %v531 = vunpack.c.l.s8.bf16 %v241
    %v532 = vunpack.c.l.s8.bf16 %v242
    %v533 = vunpack.c.h.s8.bf16 %v238
    %v534 = vunpack.c.h.s8.bf16 %v239
    %v535 = vunpack.c.h.s8.bf16 %v240
    %v536 = vunpack.c.h.s8.bf16 %v241
    %v537 = vunpack.c.h.s8.bf16 %v242
    %v538 = vunpack.c.l.s8.bf16 %v243
    %v539 = vunpack.c.l.s8.bf16 %v244
    %v540 = vunpack.c.l.s8.bf16 %v245
    %v541 = vunpack.c.l.s8.bf16 %v246
    %v542 = vunpack.c.l.s8.bf16 %v247
    %v543 = vunpack.c.h.s8.bf16 %v243
    %v544 = vunpack.c.h.s8.bf16 %v244
    %v545 = vunpack.c.h.s8.bf16 %v245
    %v546 = vunpack.c.h.s8.bf16 %v246
    %v547 = vunpack.c.h.s8.bf16 %v247
    %v548 = vunpack.c.l.s8.bf16 %v248
    %v549 = vunpack.c.l.s8.bf16 %v249
    %v550 = vunpack.c.l.s8.bf16 %v250
    %v551 = vunpack.c.l.s8.bf16 %v251
    %v552 = vunpack.c.l.s8.bf16 %v252
    %v553 = vunpack.c.h.s8.bf16 %v248
    %v554 = vunpack.c.h.s8.bf16 %v249
    %v555 = vunpack.c.h.s8.bf16 %v250
    %v556 = vunpack.c.h.s8.bf16 %v251
    %v557 = vunpack.c.h.s8.bf16 %v252
    %v558 = vunpack.c.l.s8.bf16 %v253
    %v559 = vunpack.c.l.s8.bf16 %v254
    %v560 = vunpack.c.l.s8.bf16 %v255
    %v561 = vunpack.c.l.s8.bf16 %v256
    %v562 = vunpack.c.l.s8.bf16 %v257
    %v563 = vunpack.c.h.s8.bf16 %v253
    %v564 = vunpack.c.h.s8.bf16 %v254
    %v565 = vunpack.c.h.s8.bf16 %v255
    %v566 = vunpack.c.h.s8.bf16 %v256
    %v567 = vunpack.c.h.s8.bf16 %v257
    %v568 = vunpack.c.l.s8.bf16 %v258
    %v569 = vunpack.c.l.s8.bf16 %v259
    %v570 = vunpack.c.l.s8.bf16 %v260
    %v571 = vunpack.c.l.s8.bf16 %v261
    %v572 = vunpack.c.l.s8.bf16 %v262
    %v573 = vunpack.c.h.s8.bf16 %v258
    %v574 = vunpack.c.h.s8.bf16 %v259
    %v575 = vunpack.c.h.s8.bf16 %v260
    %v576 = vunpack.c.h.s8.bf16 %v261
    %v577 = vunpack.c.h.s8.bf16 %v262
    %v578 = vunpack.c.l.s8.bf16 %v263
    %v579 = vunpack.c.l.s8.bf16 %v264
    %v580 = vunpack.c.l.s8.bf16 %v265
    %v581 = vunpack.c.l.s8.bf16 %v266
    %v582 = vunpack.c.l.s8.bf16 %v267
    %v583 = vunpack.c.h.s8.bf16 %v263
    %v584 = vunpack.c.h.s8.bf16 %v264
    %v585 = vunpack.c.h.s8.bf16 %v265
    %v586 = vunpack.c.h.s8.bf16 %v266
    %v587 = vunpack.c.h.s8.bf16 %v267
    %588 = vmatprep.subr.bf16.mxu0 %v269
    %589 = vmatpush1.bf16.msra.mxu0 %v268
    %590 = vmatprep.subr.bf16.mxu0 %v274
    %591 = vmatpush1.bf16.msra.mxu0 %v273
    %592 = vmatprep.subr.bf16.mxu0 %v279
    %593 = vmatpush1.bf16.msra.mxu0 %v278
    %594 = vmatprep.subr.bf16.mxu0 %v284
    %595 = vmatpush1.bf16.msra.mxu0 %v283
    %596 = vmatprep.subr.bf16.mxu0 %v289
    %597 = vmatpush1.bf16.msra.mxu0 %v288
    %598 = vmatprep.subr.bf16.mxu0 %v294
    %599 = vmatpush1.bf16.msra.mxu0 %v293
    %600 = vmatprep.subr.bf16.mxu0 %v299
    %601 = vmatpush1.bf16.msra.mxu0 %v298
    %602 = vmatprep.subr.bf16.mxu0 %v304
    %603 = vmatpush1.bf16.msra.mxu0 %v303
    %604 = vmatprep.subr.bf16.mxu0 %v309
    %605 = vmatpush1.bf16.msra.mxu0 %v308
    %606 = vmatprep.subr.bf16.mxu0 %v314
    %607 = vmatpush1.bf16.msra.mxu0 %v313
    %608 = vmatprep.subr.bf16.mxu0 %v319
    %609 = vmatpush1.bf16.msra.mxu0 %v318
    %610 = vmatprep.subr.bf16.mxu0 %v324
    %611 = vmatpush1.bf16.msra.mxu0 %v323
    %612 = vmatprep.subr.bf16.mxu0 %v329
    %613 = vmatpush1.bf16.msra.mxu0 %v328
    %614 = vmatprep.subr.bf16.mxu0 %v334
    %615 = vmatpush1.bf16.msra.mxu0 %v333
    %616 = vmatprep.subr.bf16.mxu0 %v339
    %617 = vmatpush1.bf16.msra.mxu0 %v338
    %618 = vmatprep.subr.bf16.mxu0 %v344
    %619 = vmatpush1.bf16.msra.mxu0 %v343
    %620 = vmatprep.mubr.bf16.mxu0 %v101
    %621 = vmatmul.mubr.bf16.gmra.mrb[0].mxu0 %v100
    %v622 = vpop.f32.mrb[0].mxu0
    %v623 = vadd.f32 0.0, %v622
    %v624 = vpop.f32.mrb[0].mxu0
    %v625 = vadd.f32 0.0, %v624
    %v626 = vpop.f32.mrb[0].mxu0
    %v627 = vpop.f32.mrb[0].mxu0
    %628 = vdwg.mxu0
    %629 = vmatprep.subr.bf16.mxu0 %v349
    %630 = vmatpush1.bf16.msra.mxu0 %v348
    %631 = vmatprep.subr.bf16.mxu0 %v354
    %632 = vmatpush1.bf16.msra.mxu0 %v353
    %633 = vmatprep.subr.bf16.mxu0 %v359
    %634 = vmatpush1.bf16.msra.mxu0 %v358
    %635 = vmatprep.subr.bf16.mxu0 %v364
    %636 = vmatpush1.bf16.msra.mxu0 %v363
    %637 = vmatprep.subr.bf16.mxu0 %v369
    %638 = vmatpush1.bf16.msra.mxu0 %v368
    %639 = vmatprep.subr.bf16.mxu0 %v374
    %640 = vmatpush1.bf16.msra.mxu0 %v373
    %641 = vmatprep.subr.bf16.mxu0 %v379
    %642 = vmatpush1.bf16.msra.mxu0 %v378
    %643 = vmatprep.subr.bf16.mxu0 %v384
    %644 = vmatpush1.bf16.msra.mxu0 %v383
    %645 = vmatprep.subr.bf16.mxu0 %v389
    %646 = vmatpush1.bf16.msra.mxu0 %v388
    %647 = vmatprep.subr.bf16.mxu0 %v394
    %648 = vmatpush1.bf16.msra.mxu0 %v393
    %649 = vmatprep.subr.bf16.mxu0 %v399
    %650 = vmatpush1.bf16.msra.mxu0 %v398
    %651 = vmatprep.subr.bf16.mxu0 %v404
    %652 = vmatpush1.bf16.msra.mxu0 %v403
    %653 = vmatprep.subr.bf16.mxu0 %v409
    %654 = vmatpush1.bf16.msra.mxu0 %v408
    %655 = vmatprep.subr.bf16.mxu0 %v414
    %656 = vmatpush1.bf16.msra.mxu0 %v413
    %657 = vmatprep.subr.bf16.mxu0 %v419
    %658 = vmatpush1.bf16.msra.mxu0 %v418
    %659 = vmatprep.subr.bf16.mxu0 %v424
    %660 = vmatpush1.bf16.msra.mxu0 %v423
    %661 = vmatprep.mubr.bf16.mxu0 %v103
    %662 = vmatmul.mubr.bf16.gmra.mrb[0].mxu0 %v102
    %v663 = vpop.f32.mrb[0].mxu0
    %v664 = vadd.f32 %v623, %v663
    %v665 = vpop.f32.mrb[0].mxu0
    %v666 = vadd.f32 %v625, %v665
    %v667 = vpop.f32.mrb[0].mxu0
    %v668 = vpop.f32.mrb[0].mxu0
    %669 = vdwg.mxu0
    %670 = vmatprep.subr.bf16.mxu0 %v429
    %671 = vmatpush1.bf16.msra.mxu0 %v428
    %672 = vmatprep.subr.bf16.mxu0 %v434
    %673 = vmatpush1.bf16.msra.mxu0 %v433
    %674 = vmatprep.subr.bf16.mxu0 %v439
    %675 = vmatpush1.bf16.msra.mxu0 %v438
    %676 = vmatprep.subr.bf16.mxu0 %v444
    %677 = vmatpush1.bf16.msra.mxu0 %v443
    %678 = vmatprep.subr.bf16.mxu0 %v449
    %679 = vmatpush1.bf16.msra.mxu0 %v448
    %680 = vmatprep.subr.bf16.mxu0 %v454
    %681 = vmatpush1.bf16.msra.mxu0 %v453
    %682 = vmatprep.subr.bf16.mxu0 %v459
    %683 = vmatpush1.bf16.msra.mxu0 %v458
    %684 = vmatprep.subr.bf16.mxu0 %v464
    %685 = vmatpush1.bf16.msra.mxu0 %v463
    %686 = vmatprep.subr.bf16.mxu0 %v469
    %687 = vmatpush1.bf16.msra.mxu0 %v468
    %688 = vmatprep.subr.bf16.mxu0 %v474
    %689 = vmatpush1.bf16.msra.mxu0 %v473
    %690 = vmatprep.subr.bf16.mxu0 %v479
    %691 = vmatpush1.bf16.msra.mxu0 %v478
    %692 = vmatprep.subr.bf16.mxu0 %v484
    %693 = vmatpush1.bf16.msra.mxu0 %v483
    %694 = vmatprep.subr.bf16.mxu0 %v489
    %695 = vmatpush1.bf16.msra.mxu0 %v488
    %696 = vmatprep.subr.bf16.mxu0 %v494
    %697 = vmatpush1.bf16.msra.mxu0 %v493
    %698 = vmatprep.subr.bf16.mxu0 %v499
    %699 = vmatpush1.bf16.msra.mxu0 %v498
    %700 = vmatprep.subr.bf16.mxu0 %v504
    %701 = vmatpush1.bf16.msra.mxu0 %v503
    %702 = vmatprep.mubr.bf16.mxu0 %v105
    %703 = vmatmul.mubr.bf16.gmra.mrb[0].mxu0 %v104
    %v704 = vpop.f32.mrb[0].mxu0
    %v705 = vadd.f32 %v664, %v704
    %v706 = vpop.f32.mrb[0].mxu0
    %v707 = vadd.f32 %v666, %v706
    %v708 = vpop.f32.mrb[0].mxu0
    %v709 = vpop.f32.mrb[0].mxu0
    %710 = vdwg.mxu0
    %711 = vmatprep.subr.bf16.mxu0 %v509
    %712 = vmatpush1.bf16.msra.mxu0 %v508
    %713 = vmatprep.subr.bf16.mxu0 %v514
    %714 = vmatpush1.bf16.msra.mxu0 %v513
    %715 = vmatprep.subr.bf16.mxu0 %v519
    %716 = vmatpush1.bf16.msra.mxu0 %v518
    %717 = vmatprep.subr.bf16.mxu0 %v524
    %718 = vmatpush1.bf16.msra.mxu0 %v523
    %719 = vmatprep.subr.bf16.mxu0 %v529
    %720 = vmatpush1.bf16.msra.mxu0 %v528
    %721 = vmatprep.subr.bf16.mxu0 %v534
    %722 = vmatpush1.bf16.msra.mxu0 %v533
    %723 = vmatprep.subr.bf16.mxu0 %v539
    %724 = vmatpush1.bf16.msra.mxu0 %v538
    %725 = vmatprep.subr.bf16.mxu0 %v544
    %726 = vmatpush1.bf16.msra.mxu0 %v543
    %727 = vmatprep.subr.bf16.mxu0 %v549
    %728 = vmatpush1.bf16.msra.mxu0 %v548
    %729 = vmatprep.subr.bf16.mxu0 %v554
    %730 = vmatpush1.bf16.msra.mxu0 %v553
    %731 = vmatprep.subr.bf16.mxu0 %v559
    %732 = vmatpush1.bf16.msra.mxu0 %v558
    %733 = vmatprep.subr.bf16.mxu0 %v564
    %734 = vmatpush1.bf16.msra.mxu0 %v563
    %735 = vmatprep.subr.bf16.mxu0 %v569
    %736 = vmatpush1.bf16.msra.mxu0 %v568
    %737 = vmatprep.subr.bf16.mxu0 %v574
    %738 = vmatpush1.bf16.msra.mxu0 %v573
    %739 = vmatprep.subr.bf16.mxu0 %v579
    %740 = vmatpush1.bf16.msra.mxu0 %v578
    %741 = vmatprep.subr.bf16.mxu0 %v584
    %742 = vmatpush1.bf16.msra.mxu0 %v583
    %743 = vmatprep.mubr.bf16.mxu0 %v107
    %744 = vmatmul.mubr.bf16.gmra.mrb[0].mxu0 %v106
    %v745 = vpop.f32.mrb[0].mxu0
    %v746 = vadd.f32 %v705, %v745
    %v747 = vpop.f32.mrb[0].mxu0
    %v748 = vadd.f32 %v707, %v747
    %v749 = vpop.f32.mrb[0].mxu0
    %v750 = vpop.f32.mrb[0].mxu0
    %751 = vdwg.mxu0
    %752 = vmatprep.subr.bf16.mxu0 %v271
    %753 = vmatpush1.bf16.msra.mxu0 %v270
    %754 = vmatprep.subr.bf16.mxu0 %v276
    %755 = vmatpush1.bf16.msra.mxu0 %v275
    %756 = vmatprep.subr.bf16.mxu0 %v281
    %757 = vmatpush1.bf16.msra.mxu0 %v280
    %758 = vmatprep.subr.bf16.mxu0 %v286
    %759 = vmatpush1.bf16.msra.mxu0 %v285
    %760 = vmatprep.subr.bf16.mxu0 %v291
    %761 = vmatpush1.bf16.msra.mxu0 %v290
    %762 = vmatprep.subr.bf16.mxu0 %v296
    %763 = vmatpush1.bf16.msra.mxu0 %v295
    %764 = vmatprep.subr.bf16.mxu0 %v301
    %765 = vmatpush1.bf16.msra.mxu0 %v300
    %766 = vmatprep.subr.bf16.mxu0 %v306
    %767 = vmatpush1.bf16.msra.mxu0 %v305
    %768 = vmatprep.subr.bf16.mxu0 %v311
    %769 = vmatpush1.bf16.msra.mxu0 %v310
    %770 = vmatprep.subr.bf16.mxu0 %v316
    %771 = vmatpush1.bf16.msra.mxu0 %v315
    %772 = vmatprep.subr.bf16.mxu0 %v321
    %773 = vmatpush1.bf16.msra.mxu0 %v320
    %774 = vmatprep.subr.bf16.mxu0 %v326
    %775 = vmatpush1.bf16.msra.mxu0 %v325
    %776 = vmatprep.subr.bf16.mxu0 %v331
    %777 = vmatpush1.bf16.msra.mxu0 %v330
    %778 = vmatprep.subr.bf16.mxu0 %v336
    %779 = vmatpush1.bf16.msra.mxu0 %v335
    %780 = vmatprep.subr.bf16.mxu0 %v341
    %781 = vmatpush1.bf16.msra.mxu0 %v340
    %782 = vmatprep.subr.bf16.mxu0 %v346
    %783 = vmatpush1.bf16.msra.mxu0 %v345
    %784 = vmatprep.mubr.bf16.mxu0 %v101
    %785 = vmatmul.mubr.bf16.gmra.mrb[0].mxu0 %v100
    %v786 = vpop.f32.mrb[0].mxu0
    %v787 = vadd.f32 0.0, %v786
    %v788 = vpop.f32.mrb[0].mxu0
    %v789 = vadd.f32 0.0, %v788
    %v790 = vpop.f32.mrb[0].mxu0
    %v791 = vpop.f32.mrb[0].mxu0
    %792 = vdwg.mxu0
    %793 = vmatprep.subr.bf16.mxu0 %v351
    %794 = vmatpush1.bf16.msra.mxu0 %v350
    %795 = vmatprep.subr.bf16.mxu0 %v356
    %796 = vmatpush1.bf16.msra.mxu0 %v355
    %797 = vmatprep.subr.bf16.mxu0 %v361
    %798 = vmatpush1.bf16.msra.mxu0 %v360
    %799 = vmatprep.subr.bf16.mxu0 %v366
    %800 = vmatpush1.bf16.msra.mxu0 %v365
    %801 = vmatprep.subr.bf16.mxu0 %v371
    %802 = vmatpush1.bf16.msra.mxu0 %v370
    %803 = vmatprep.subr.bf16.mxu0 %v376
    %804 = vmatpush1.bf16.msra.mxu0 %v375
    %805 = vmatprep.subr.bf16.mxu0 %v381
    %806 = vmatpush1.bf16.msra.mxu0 %v380
    %807 = vmatprep.subr.bf16.mxu0 %v386
    %808 = vmatpush1.bf16.msra.mxu0 %v385
    %809 = vmatprep.subr.bf16.mxu0 %v391
    %810 = vmatpush1.bf16.msra.mxu0 %v390
    %811 = vmatprep.subr.bf16.mxu0 %v396
    %812 = vmatpush1.bf16.msra.mxu0 %v395
    %813 = vmatprep.subr.bf16.mxu0 %v401
    %814 = vmatpush1.bf16.msra.mxu0 %v400
    %815 = vmatprep.subr.bf16.mxu0 %v406
    %816 = vmatpush1.bf16.msra.mxu0 %v405
    %817 = vmatprep.subr.bf16.mxu0 %v411
    %818 = vmatpush1.bf16.msra.mxu0 %v410
    %819 = vmatprep.subr.bf16.mxu0 %v416
    %820 = vmatpush1.bf16.msra.mxu0 %v415
    %821 = vmatprep.subr.bf16.mxu0 %v421
    %822 = vmatpush1.bf16.msra.mxu0 %v420
    %823 = vmatprep.subr.bf16.mxu0 %v426
    %824 = vmatpush1.bf16.msra.mxu0 %v425
    %825 = vmatprep.mubr.bf16.mxu0 %v103
    %826 = vmatmul.mubr.bf16.gmra.mrb[0].mxu0 %v102
    %v827 = vpop.f32.mrb[0].mxu0
    %v828 = vadd.f32 %v787, %v827
    %v829 = vpop.f32.mrb[0].mxu0
    %v830 = vadd.f32 %v789, %v829
    %v831 = vpop.f32.mrb[0].mxu0
    %v832 = vpop.f32.mrb[0].mxu0
    %833 = vdwg.mxu0
    %834 = vmatprep.subr.bf16.mxu0 %v431
    %835 = vmatpush1.bf16.msra.mxu0 %v430
    %836 = vmatprep.subr.bf16.mxu0 %v436
    %837 = vmatpush1.bf16.msra.mxu0 %v435
    %838 = vmatprep.subr.bf16.mxu0 %v441
    %839 = vmatpush1.bf16.msra.mxu0 %v440
    %840 = vmatprep.subr.bf16.mxu0 %v446
    %841 = vmatpush1.bf16.msra.mxu0 %v445
    %842 = vmatprep.subr.bf16.mxu0 %v451
    %843 = vmatpush1.bf16.msra.mxu0 %v450
    %844 = vmatprep.subr.bf16.mxu0 %v456
    %845 = vmatpush1.bf16.msra.mxu0 %v455
    %846 = vmatprep.subr.bf16.mxu0 %v461
    %847 = vmatpush1.bf16.msra.mxu0 %v460
    %848 = vmatprep.subr.bf16.mxu0 %v466
    %849 = vmatpush1.bf16.msra.mxu0 %v465
    %850 = vmatprep.subr.bf16.mxu0 %v471
    %851 = vmatpush1.bf16.msra.mxu0 %v470
    %852 = vmatprep.subr.bf16.mxu0 %v476
    %853 = vmatpush1.bf16.msra.mxu0 %v475
    %854 = vmatprep.subr.bf16.mxu0 %v481
    %855 = vmatpush1.bf16.msra.mxu0 %v480
    %856 = vmatprep.subr.bf16.mxu0 %v486
    %857 = vmatpush1.bf16.msra.mxu0 %v485
    %858 = vmatprep.subr.bf16.mxu0 %v491
    %859 = vmatpush1.bf16.msra.mxu0 %v490
    %860 = vmatprep.subr.bf16.mxu0 %v496
    %861 = vmatpush1.bf16.msra.mxu0 %v495
    %862 = vmatprep.subr.bf16.mxu0 %v501
    %863 = vmatpush1.bf16.msra.mxu0 %v500
    %864 = vmatprep.subr.bf16.mxu0 %v506
    %865 = vmatpush1.bf16.msra.mxu0 %v505
    %866 = vmatprep.mubr.bf16.mxu0 %v105
    %867 = vmatmul.mubr.bf16.gmra.mrb[0].mxu0 %v104
    %v868 = vpop.f32.mrb[0].mxu0
    %v869 = vadd.f32 %v828, %v868
    %v870 = vpop.f32.mrb[0].mxu0
    %v871 = vadd.f32 %v830, %v870
    %v872 = vpop.f32.mrb[0].mxu0
    %v873 = vpop.f32.mrb[0].mxu0
    %874 = vdwg.mxu0
    %875 = vmatprep.subr.bf16.mxu0 %v511
    %876 = vmatpush1.bf16.msra.mxu0 %v510
    %877 = vmatprep.subr.bf16.mxu0 %v516
    %878 = vmatpush1.bf16.msra.mxu0 %v515
    %879 = vmatprep.subr.bf16.mxu0 %v521
    %880 = vmatpush1.bf16.msra.mxu0 %v520
    %881 = vmatprep.subr.bf16.mxu0 %v526
    %882 = vmatpush1.bf16.msra.mxu0 %v525
    %883 = vmatprep.subr.bf16.mxu0 %v531
    %884 = vmatpush1.bf16.msra.mxu0 %v530
    %885 = vmatprep.subr.bf16.mxu0 %v536
    %886 = vmatpush1.bf16.msra.mxu0 %v535
    %887 = vmatprep.subr.bf16.mxu0 %v541
    %888 = vmatpush1.bf16.msra.mxu0 %v540
    %889 = vmatprep.subr.bf16.mxu0 %v546
    %890 = vmatpush1.bf16.msra.mxu0 %v545
    %891 = vmatprep.subr.bf16.mxu0 %v551
    %892 = vmatpush1.bf16.msra.mxu0 %v550
    %893 = vmatprep.subr.bf16.mxu0 %v556
    %894 = vmatpush1.bf16.msra.mxu0 %v555
    %895 = vmatprep.subr.bf16.mxu0 %v561
    %896 = vmatpush1.bf16.msra.mxu0 %v560
    %897 = vmatprep.subr.bf16.mxu0 %v566
    %898 = vmatpush1.bf16.msra.mxu0 %v565
    %899 = vmatprep.subr.bf16.mxu0 %v571
    %900 = vmatpush1.bf16.msra.mxu0 %v570
    %901 = vmatprep.subr.bf16.mxu0 %v576
    %902 = vmatpush1.bf16.msra.mxu0 %v575
    %903 = vmatprep.subr.bf16.mxu0 %v581
    %904 = vmatpush1.bf16.msra.mxu0 %v580
    %905 = vmatprep.subr.bf16.mxu0 %v586
    %906 = vmatpush1.bf16.msra.mxu0 %v585
    %907 = vmatprep.mubr.bf16.mxu0 %v107
    %908 = vmatmul.mubr.bf16.gmra.mrb[0].mxu0 %v106
    %v909 = vpop.f32.mrb[0].mxu0
    %v910 = vadd.f32 %v869, %v909
    %v911 = vpop.f32.mrb[0].mxu0
    %v912 = vadd.f32 %v871, %v911
    %v913 = vpop.f32.mrb[0].mxu0
    %v914 = vpop.f32.mrb[0].mxu0
    %915 = vdwg.mxu0
    %916 = vmatprep.subr.bf16.mxu0 0
    %917 = vmatpush1.bf16.msra.mxu0 %v272
    %918 = vmatprep.subr.bf16.mxu0 0
    %919 = vmatpush1.bf16.msra.mxu0 %v277
    %920 = vmatprep.subr.bf16.mxu0 0
    %921 = vmatpush1.bf16.msra.mxu0 %v282
    %922 = vmatprep.subr.bf16.mxu0 0
    %923 = vmatpush1.bf16.msra.mxu0 %v287
    %924 = vmatprep.subr.bf16.mxu0 0
    %925 = vmatpush1.bf16.msra.mxu0 %v292
    %926 = vmatprep.subr.bf16.mxu0 0
    %927 = vmatpush1.bf16.msra.mxu0 %v297
    %928 = vmatprep.subr.bf16.mxu0 0
    %929 = vmatpush1.bf16.msra.mxu0 %v302
    %930 = vmatprep.subr.bf16.mxu0 0
    %931 = vmatpush1.bf16.msra.mxu0 %v307
    %932 = vmatprep.subr.bf16.mxu0 0
    %933 = vmatpush1.bf16.msra.mxu0 %v312
    %934 = vmatprep.subr.bf16.mxu0 0
    %935 = vmatpush1.bf16.msra.mxu0 %v317
    %936 = vmatprep.subr.bf16.mxu0 0
    %937 = vmatpush1.bf16.msra.mxu0 %v322
    %938 = vmatprep.subr.bf16.mxu0 0
    %939 = vmatpush1.bf16.msra.mxu0 %v327
    %940 = vmatprep.subr.bf16.mxu0 0
    %941 = vmatpush1.bf16.msra.mxu0 %v332
    %942 = vmatprep.subr.bf16.mxu0 0
    %943 = vmatpush1.bf16.msra.mxu0 %v337
    %944 = vmatprep.subr.bf16.mxu0 0
    %945 = vmatpush1.bf16.msra.mxu0 %v342
    %946 = vmatprep.subr.bf16.mxu0 0
    %947 = vmatpush1.bf16.msra.mxu0 %v347
    %948 = vmatprep.mubr.bf16.mxu0 %v101
    %949 = vmatmul.mubr.bf16.gmra.mrb[0].mxu0 %v100
    %v950 = vpop.f32.mrb[0].mxu0
    %v951 = vadd.f32 0.0, %v950
    %v952 = vpop.f32.mrb[0].mxu0
    %v953 = vpop.f32.mrb[0].mxu0
    %v954 = vpop.f32.mrb[0].mxu0
    %955 = vdwg.mxu0
    %956 = vmatprep.subr.bf16.mxu0 0
    %957 = vmatpush1.bf16.msra.mxu0 %v352
    %958 = vmatprep.subr.bf16.mxu0 0
    %959 = vmatpush1.bf16.msra.mxu0 %v357
    %960 = vmatprep.subr.bf16.mxu0 0
    %961 = vmatpush1.bf16.msra.mxu0 %v362
    %962 = vmatprep.subr.bf16.mxu0 0
    %963 = vmatpush1.bf16.msra.mxu0 %v367
    %964 = vmatprep.subr.bf16.mxu0 0
    %965 = vmatpush1.bf16.msra.mxu0 %v372
    %966 = vmatprep.subr.bf16.mxu0 0
    %967 = vmatpush1.bf16.msra.mxu0 %v377
    %968 = vmatprep.subr.bf16.mxu0 0
    %969 = vmatpush1.bf16.msra.mxu0 %v382
    %970 = vmatprep.subr.bf16.mxu0 0
    %971 = vmatpush1.bf16.msra.mxu0 %v387
    %972 = vmatprep.subr.bf16.mxu0 0
    %973 = vmatpush1.bf16.msra.mxu0 %v392
    %974 = vmatprep.subr.bf16.mxu0 0
    %975 = vmatpush1.bf16.msra.mxu0 %v397
    %976 = vmatprep.subr.bf16.mxu0 0
    %977 = vmatpush1.bf16.msra.mxu0 %v402
    %978 = vmatprep.subr.bf16.mxu0 0
    %979 = vmatpush1.bf16.msra.mxu0 %v407
    %980 = vmatprep.subr.bf16.mxu0 0
    %981 = vmatpush1.bf16.msra.mxu0 %v412
    %982 = vmatprep.subr.bf16.mxu0 0
    %983 = vmatpush1.bf16.msra.mxu0 %v417
    %984 = vmatprep.subr.bf16.mxu0 0
    %985 = vmatpush1.bf16.msra.mxu0 %v422
    %986 = vmatprep.subr.bf16.mxu0 0
    %987 = vmatpush1.bf16.msra.mxu0 %v427
    %988 = vmatprep.mubr.bf16.mxu0 %v103
    %989 = vmatmul.mubr.bf16.gmra.mrb[0].mxu0 %v102
    %v990 = vpop.f32.mrb[0].mxu0
    %v991 = vadd.f32 %v951, %v990
    %v992 = vpop.f32.mrb[0].mxu0
    %v993 = vpop.f32.mrb[0].mxu0
    %v994 = vpop.f32.mrb[0].mxu0
    %995 = vdwg.mxu0
    %996 = vmatprep.subr.bf16.mxu0 0
    %997 = vmatpush1.bf16.msra.mxu0 %v432
    %998 = vmatprep.subr.bf16.mxu0 0
    %999 = vmatpush1.bf16.msra.mxu0 %v437
    %1000 = vmatprep.subr.bf16.mxu0 0
    %1001 = vmatpush1.bf16.msra.mxu0 %v442
    %1002 = vmatprep.subr.bf16.mxu0 0
    %1003 = vmatpush1.bf16.msra.mxu0 %v447
    %1004 = vmatprep.subr.bf16.mxu0 0
    %1005 = vmatpush1.bf16.msra.mxu0 %v452
    %1006 = vmatprep.subr.bf16.mxu0 0
    %1007 = vmatpush1.bf16.msra.mxu0 %v457
    %1008 = vmatprep.subr.bf16.mxu0 0
    %1009 = vmatpush1.bf16.msra.mxu0 %v462
    %1010 = vmatprep.subr.bf16.mxu0 0
    %1011 = vmatpush1.bf16.msra.mxu0 %v467
    %1012 = vmatprep.subr.bf16.mxu0 0
    %1013 = vmatpush1.bf16.msra.mxu0 %v472
    %1014 = vmatprep.subr.bf16.mxu0 0
    %1015 = vmatpush1.bf16.msra.mxu0 %v477
    %1016 = vmatprep.subr.bf16.mxu0 0
    %1017 = vmatpush1.bf16.msra.mxu0 %v482
    %1018 = vmatprep.subr.bf16.mxu0 0
    %1019 = vmatpush1.bf16.msra.mxu0 %v487
    %1020 = vmatprep.subr.bf16.mxu0 0
    %1021 = vmatpush1.bf16.msra.mxu0 %v492
    %1022 = vmatprep.subr.bf16.mxu0 0
    %1023 = vmatpush1.bf16.msra.mxu0 %v497
    %1024 = vmatprep.subr.bf16.mxu0 0
    %1025 = vmatpush1.bf16.msra.mxu0 %v502
    %1026 = vmatprep.subr.bf16.mxu0 0
    %1027 = vmatpush1.bf16.msra.mxu0 %v507
    %1028 = vmatprep.mubr.bf16.mxu0 %v105
    %1029 = vmatmul.mubr.bf16.gmra.mrb[0].mxu0 %v104
    %v1030 = vpop.f32.mrb[0].mxu0
    %v1031 = vadd.f32 %v991, %v1030
    %v1032 = vpop.f32.mrb[0].mxu0
    %v1033 = vpop.f32.mrb[0].mxu0
    %v1034 = vpop.f32.mrb[0].mxu0
    %1035 = vdwg.mxu0
    %1036 = vmatprep.subr.bf16.mxu0 0
    %1037 = vmatpush1.bf16.msra.mxu0 %v512
    %1038 = vmatprep.subr.bf16.mxu0 0
    %1039 = vmatpush1.bf16.msra.mxu0 %v517
    %1040 = vmatprep.subr.bf16.mxu0 0
    %1041 = vmatpush1.bf16.msra.mxu0 %v522
    %1042 = vmatprep.subr.bf16.mxu0 0
    %1043 = vmatpush1.bf16.msra.mxu0 %v527
    %1044 = vmatprep.subr.bf16.mxu0 0
    %1045 = vmatpush1.bf16.msra.mxu0 %v532
    %1046 = vmatprep.subr.bf16.mxu0 0
    %1047 = vmatpush1.bf16.msra.mxu0 %v537
    %1048 = vmatprep.subr.bf16.mxu0 0
    %1049 = vmatpush1.bf16.msra.mxu0 %v542
    %1050 = vmatprep.subr.bf16.mxu0 0
    %1051 = vmatpush1.bf16.msra.mxu0 %v547
    %1052 = vmatprep.subr.bf16.mxu0 0
    %1053 = vmatpush1.bf16.msra.mxu0 %v552
    %1054 = vmatprep.subr.bf16.mxu0 0
    %1055 = vmatpush1.bf16.msra.mxu0 %v557
    %1056 = vmatprep.subr.bf16.mxu0 0
    %1057 = vmatpush1.bf16.msra.mxu0 %v562
    %1058 = vmatprep.subr.bf16.mxu0 0
    %1059 = vmatpush1.bf16.msra.mxu0 %v567
    %1060 = vmatprep.subr.bf16.mxu0 0
    %1061 = vmatpush1.bf16.msra.mxu0 %v572
    %1062 = vmatprep.subr.bf16.mxu0 0
    %1063 = vmatpush1.bf16.msra.mxu0 %v577
    %1064 = vmatprep.subr.bf16.mxu0 0
    %1065 = vmatpush1.bf16.msra.mxu0 %v582
    %1066 = vmatprep.subr.bf16.mxu0 0
    %1067 = vmatpush1.bf16.msra.mxu0 %v587
    %1068 = vmatprep.mubr.bf16.mxu0 %v107
    %1069 = vmatmul.mubr.bf16.gmra.mrb[0].mxu0 %v106
    %v1070 = vpop.f32.mrb[0].mxu0
    %v1071 = vadd.f32 %v1031, %v1070
    %v1072 = vpop.f32.mrb[0].mxu0
    %v1073 = vpop.f32.mrb[0].mxu0
    %v1074 = vpop.f32.mrb[0].mxu0
    %1075 = vdwg.mxu0
    %v1076 = vld [vmem:[#allocation7] ss:$2 sm:$0x1f]
    %v1078 = vlaneseq
    %v1079 = vshrl.u32 %v1078, 7
    %v1080 = vsub.s32 0, %v1079
    %v1081 = vrot.slane %v1076, %v1080
    %v1082 = vlaneseq
    %v1083 = vshrl.u32 %v1082, 7
    %v1084 = vsub.s32 1, %v1083
    %v1085 = vrot.slane %v1076, %v1084
    %v1086 = vlaneseq
    %v1087 = vshrl.u32 %v1086, 7
    %v1088 = vsub.s32 2, %v1087
    %v1089 = vrot.slane %v1076, %v1088
    %v1090 = vlaneseq
    %v1091 = vshrl.u32 %v1090, 7
    %v1092 = vsub.s32 3, %v1091
    %v1093 = vrot.slane %v1076, %v1092
    %v1094 = vlaneseq
    %v1095 = vshrl.u32 %v1094, 7
    %v1096 = vsub.s32 4, %v1095
    %v1097 = vrot.slane %v1076, %v1096
    %v1103 = vmul.f32 %v746, %v1081
    %v1104 = vmul.f32 %v748, %v1085
    %v1105 = vmul.f32 %v910, %v1089
    %v1106 = vmul.f32 %v912, %v1093
    %v1107 = vmul.f32 %v1071, %v1097
    %s1108 = scalar_lea.vmem [#allocation7], 1
    %v1109 = vld [vmem:[%s1108] ss:$2 sm:$0x1f]
    %v1111 = vlaneseq
    %v1112 = vshrl.u32 %v1111, 7
    %v1113 = vsub.s32 0, %v1112
    %v1114 = vrot.slane %v1109, %v1113
    %v1115 = vlaneseq
    %v1116 = vshrl.u32 %v1115, 7
    %v1117 = vsub.s32 1, %v1116
    %v1118 = vrot.slane %v1109, %v1117
    %v1119 = vlaneseq
    %v1120 = vshrl.u32 %v1119, 7
    %v1121 = vsub.s32 2, %v1120
    %v1122 = vrot.slane %v1109, %v1121
    %v1123 = vlaneseq
    %v1124 = vshrl.u32 %v1123, 7
    %v1125 = vsub.s32 3, %v1124
    %v1126 = vrot.slane %v1109, %v1125
    %v1127 = vlaneseq
    %v1128 = vshrl.u32 %v1127, 7
    %v1129 = vsub.s32 4, %v1128
    %v1130 = vrot.slane %v1109, %v1129
    %v1136 = vadd.f32 %v1103, %v1114
    %v1137 = vadd.f32 %v1104, %v1118
    %v1138 = vadd.f32 %v1105, %v1122
    %v1139 = vadd.f32 %v1106, %v1126
    %v1140 = vadd.f32 %v1107, %v1130
    %v1141 = vmax.f32 %v1136, 0.0
    %v1142 = vmax.f32 %v1137, 0.0
    %v1143 = vmax.f32 %v1138, 0.0
    %v1144 = vmax.f32 %v1139, 0.0
    %v1145 = vmax.f32 %v1140, 0.0
    %v1146 = vld [vmem:[#allocation8] sm:$0xff]
    %v1147 = vld [vmem:[#allocation8 + $0x8] sm:$0xff]
    %v1148 = vld [vmem:[#allocation8 + $0x10] sm:$0xff]
    %v1149 = vld [vmem:[#allocation8 + $0x18] sm:$0xff]
    %v1150 = vld [vmem:[#allocation8 + $0x20] sm:$0xff]
    %v1151 = vld [vmem:[#allocation8 + $0x28] sm:$0xff]
    %v1152 = vld [vmem:[#allocation8 + $0x30] sm:$0xff]
    %v1153 = vld [vmem:[#allocation8 + $0x38] sm:$0xff]
    %v1154 = vld [vmem:[#allocation8 + $0x40] sm:$0xff]
    %v1155 = vld [vmem:[#allocation8 + $0x48] sm:$0xff]
    %v1156 = vld [vmem:[#allocation8 + $0x50] sm:$0xff]
    %v1157 = vld [vmem:[#allocation8 + $0x58] sm:$0xff]
    %v1158 = vld [vmem:[#allocation8 + $0x60] sm:$0xff]
    %v1159 = vld [vmem:[#allocation8 + $0x68] sm:$0xff]
    %v1160 = vld [vmem:[#allocation8 + $0x70] sm:$0xff]
    %v1161 = vld [vmem:[#allocation8 + $0x78] sm:$0xff]
    %v1162 = vld [vmem:[#allocation8 + $0x80] sm:$0xff]
    %v1163 = vld [vmem:[#allocation8 + $0x88] sm:$0xff]
    %v1164 = vld [vmem:[#allocation8 + $0x90] sm:$0xff]
    %v1165 = vld [vmem:[#allocation8 + $0x98] sm:$0xff]
    %v1166 = vld [vmem:[#allocation8 + $0xa0] sm:$0xff]
    %v1167 = vld [vmem:[#allocation8 + $0xa8] sm:$0xff]
    %v1168 = vld [vmem:[#allocation8 + $0xb0] sm:$0xff]
    %v1169 = vld [vmem:[#allocation8 + $0xb8] sm:$0xff]
    %v1170 = vld [vmem:[#allocation8 + $0xc0] sm:$0xff]
    %v1171 = vld [vmem:[#allocation8 + $0xc8] sm:$0xff]
    %v1172 = vld [vmem:[#allocation8 + $0xd0] sm:$0xff]
    %v1173 = vld [vmem:[#allocation8 + $0xd8] sm:$0xff]
    %v1174 = vld [vmem:[#allocation8 + $0xe0] sm:$0xff]
    %v1175 = vld [vmem:[#allocation8 + $0xe8] sm:$0xff]
    %v1176 = vld [vmem:[#allocation8 + $0xf0] sm:$0xff]
    %v1177 = vld [vmem:[#allocation8 + $0xf8] sm:$0xff]
    %v1178 = vld [vmem:[#allocation8 + $0x100] sm:$0xff]
    %v1179 = vld [vmem:[#allocation8 + $0x108] sm:$0xff]
    %v1180 = vld [vmem:[#allocation8 + $0x110] sm:$0xff]
    %v1181 = vld [vmem:[#allocation8 + $0x118] sm:$0xff]
    %v1182 = vld [vmem:[#allocation8 + $0x120] sm:$0xff]
    %v1183 = vld [vmem:[#allocation8 + $0x128] sm:$0xff]
    %v1184 = vld [vmem:[#allocation8 + $0x130] sm:$0xff]
    %v1185 = vld [vmem:[#allocation8 + $0x138] sm:$0xff]
    %v1186 = vld [vmem:[#allocation8 + $0x140] sm:$0xff]
    %v1187 = vld [vmem:[#allocation8 + $0x148] sm:$0xff]
    %v1188 = vld [vmem:[#allocation8 + $0x150] sm:$0xff]
    %v1189 = vld [vmem:[#allocation8 + $0x158] sm:$0xff]
    %v1190 = vld [vmem:[#allocation8 + $0x160] sm:$0xff]
    %v1191 = vld [vmem:[#allocation8 + $0x168] sm:$0xff]
    %v1192 = vld [vmem:[#allocation8 + $0x170] sm:$0xff]
    %v1193 = vld [vmem:[#allocation8 + $0x178] sm:$0xff]
    %v1194 = vld [vmem:[#allocation8 + $0x180] sm:$0xff]
    %v1195 = vld [vmem:[#allocation8 + $0x188] sm:$0xff]
    %v1196 = vld [vmem:[#allocation8 + $0x190] sm:$0xff]
    %v1197 = vld [vmem:[#allocation8 + $0x198] sm:$0xff]
    %v1198 = vld [vmem:[#allocation8 + $0x1a0] sm:$0xff]
    %v1199 = vld [vmem:[#allocation8 + $0x1a8] sm:$0xff]
    %v1200 = vld [vmem:[#allocation8 + $0x1b0] sm:$0xff]
    %v1201 = vld [vmem:[#allocation8 + $0x1b8] sm:$0xff]
    %v1202 = vld [vmem:[#allocation8 + $0x1c0] sm:$0xff]
    %v1203 = vld [vmem:[#allocation8 + $0x1c8] sm:$0xff]
    %v1204 = vld [vmem:[#allocation8 + $0x1d0] sm:$0xff]
    %v1205 = vld [vmem:[#allocation8 + $0x1d8] sm:$0xff]
    %v1206 = vunpack.c.l.s8.bf16 %v1146
    %v1207 = vunpack.c.l.s8.bf16 %v1147
    %v1208 = vunpack.c.l.s8.bf16 %v1148
    %v1209 = vunpack.c.h.s8.bf16 %v1146
    %v1210 = vunpack.c.h.s8.bf16 %v1147
    %v1211 = vunpack.c.h.s8.bf16 %v1148
    %v1212 = vunpack.c.l.s8.bf16 %v1149
    %v1213 = vunpack.c.l.s8.bf16 %v1150
    %v1214 = vunpack.c.l.s8.bf16 %v1151
    %v1215 = vunpack.c.h.s8.bf16 %v1149
    %v1216 = vunpack.c.h.s8.bf16 %v1150
    %v1217 = vunpack.c.h.s8.bf16 %v1151
    %v1218 = vunpack.c.l.s8.bf16 %v1152
    %v1219 = vunpack.c.l.s8.bf16 %v1153
    %v1220 = vunpack.c.l.s8.bf16 %v1154
    %v1221 = vunpack.c.h.s8.bf16 %v1152
    %v1222 = vunpack.c.h.s8.bf16 %v1153
    %v1223 = vunpack.c.h.s8.bf16 %v1154
    %v1224 = vunpack.c.l.s8.bf16 %v1155
    %v1225 = vunpack.c.l.s8.bf16 %v1156
    %v1226 = vunpack.c.l.s8.bf16 %v1157
    %v1227 = vunpack.c.h.s8.bf16 %v1155
    %v1228 = vunpack.c.h.s8.bf16 %v1156
    %v1229 = vunpack.c.h.s8.bf16 %v1157
    %v1230 = vunpack.c.l.s8.bf16 %v1158
    %v1231 = vunpack.c.l.s8.bf16 %v1159
    %v1232 = vunpack.c.l.s8.bf16 %v1160
    %v1233 = vunpack.c.h.s8.bf16 %v1158
    %v1234 = vunpack.c.h.s8.bf16 %v1159
    %v1235 = vunpack.c.h.s8.bf16 %v1160
    %v1236 = vunpack.c.l.s8.bf16 %v1161
    %v1237 = vunpack.c.l.s8.bf16 %v1162
    %v1238 = vunpack.c.l.s8.bf16 %v1163
    %v1239 = vunpack.c.h.s8.bf16 %v1161
    %v1240 = vunpack.c.h.s8.bf16 %v1162
    %v1241 = vunpack.c.h.s8.bf16 %v1163
    %v1242 = vunpack.c.l.s8.bf16 %v1164
    %v1243 = vunpack.c.l.s8.bf16 %v1165
    %v1244 = vunpack.c.l.s8.bf16 %v1166
    %v1245 = vunpack.c.h.s8.bf16 %v1164
    %v1246 = vunpack.c.h.s8.bf16 %v1165
    %v1247 = vunpack.c.h.s8.bf16 %v1166
    %v1248 = vunpack.c.l.s8.bf16 %v1167
    %v1249 = vunpack.c.l.s8.bf16 %v1168
    %v1250 = vunpack.c.l.s8.bf16 %v1169
    %v1251 = vunpack.c.h.s8.bf16 %v1167
    %v1252 = vunpack.c.h.s8.bf16 %v1168
    %v1253 = vunpack.c.h.s8.bf16 %v1169
    %v1254 = vunpack.c.l.s8.bf16 %v1170
    %v1255 = vunpack.c.l.s8.bf16 %v1171
    %v1256 = vunpack.c.l.s8.bf16 %v1172
    %v1257 = vunpack.c.h.s8.bf16 %v1170
    %v1258 = vunpack.c.h.s8.bf16 %v1171
    %v1259 = vunpack.c.h.s8.bf16 %v1172
    %v1260 = vunpack.c.l.s8.bf16 %v1173
    %v1261 = vunpack.c.l.s8.bf16 %v1174
    %v1262 = vunpack.c.l.s8.bf16 %v1175
    %v1263 = vunpack.c.h.s8.bf16 %v1173
    %v1264 = vunpack.c.h.s8.bf16 %v1174
    %v1265 = vunpack.c.h.s8.bf16 %v1175
    %v1266 = vunpack.c.l.s8.bf16 %v1176
    %v1267 = vunpack.c.l.s8.bf16 %v1177
    %v1268 = vunpack.c.l.s8.bf16 %v1178
    %v1269 = vunpack.c.h.s8.bf16 %v1176
    %v1270 = vunpack.c.h.s8.bf16 %v1177
    %v1271 = vunpack.c.h.s8.bf16 %v1178
    %v1272 = vunpack.c.l.s8.bf16 %v1179
    %v1273 = vunpack.c.l.s8.bf16 %v1180
    %v1274 = vunpack.c.l.s8.bf16 %v1181
    %v1275 = vunpack.c.h.s8.bf16 %v1179
    %v1276 = vunpack.c.h.s8.bf16 %v1180
    %v1277 = vunpack.c.h.s8.bf16 %v1181
    %v1278 = vunpack.c.l.s8.bf16 %v1182
    %v1279 = vunpack.c.l.s8.bf16 %v1183
    %v1280 = vunpack.c.l.s8.bf16 %v1184
    %v1281 = vunpack.c.h.s8.bf16 %v1182
    %v1282 = vunpack.c.h.s8.bf16 %v1183
    %v1283 = vunpack.c.h.s8.bf16 %v1184
    %v1284 = vunpack.c.l.s8.bf16 %v1185
    %v1285 = vunpack.c.l.s8.bf16 %v1186
    %v1286 = vunpack.c.l.s8.bf16 %v1187
    %v1287 = vunpack.c.h.s8.bf16 %v1185
    %v1288 = vunpack.c.h.s8.bf16 %v1186
    %v1289 = vunpack.c.h.s8.bf16 %v1187
    %v1290 = vunpack.c.l.s8.bf16 %v1188
    %v1291 = vunpack.c.l.s8.bf16 %v1189
    %v1292 = vunpack.c.l.s8.bf16 %v1190
    %v1293 = vunpack.c.h.s8.bf16 %v1188
    %v1294 = vunpack.c.h.s8.bf16 %v1189
    %v1295 = vunpack.c.h.s8.bf16 %v1190
    %v1296 = vunpack.c.l.s8.bf16 %v1191
    %v1297 = vunpack.c.l.s8.bf16 %v1192
    %v1298 = vunpack.c.l.s8.bf16 %v1193
    %v1299 = vunpack.c.h.s8.bf16 %v1191
    %v1300 = vunpack.c.h.s8.bf16 %v1192
    %v1301 = vunpack.c.h.s8.bf16 %v1193
    %v1302 = vunpack.c.l.s8.bf16 %v1194
    %v1303 = vunpack.c.l.s8.bf16 %v1195
    %v1304 = vunpack.c.l.s8.bf16 %v1196
    %v1305 = vunpack.c.h.s8.bf16 %v1194
    %v1306 = vunpack.c.h.s8.bf16 %v1195
    %v1307 = vunpack.c.h.s8.bf16 %v1196
    %v1308 = vunpack.c.l.s8.bf16 %v1197
    %v1309 = vunpack.c.l.s8.bf16 %v1198
    %v1310 = vunpack.c.l.s8.bf16 %v1199
    %v1311 = vunpack.c.h.s8.bf16 %v1197
    %v1312 = vunpack.c.h.s8.bf16 %v1198
    %v1313 = vunpack.c.h.s8.bf16 %v1199
    %v1314 = vunpack.c.l.s8.bf16 %v1200
    %v1315 = vunpack.c.l.s8.bf16 %v1201
    %v1316 = vunpack.c.l.s8.bf16 %v1202
    %v1317 = vunpack.c.h.s8.bf16 %v1200
    %v1318 = vunpack.c.h.s8.bf16 %v1201
    %v1319 = vunpack.c.h.s8.bf16 %v1202
    %v1320 = vunpack.c.l.s8.bf16 %v1203
    %v1321 = vunpack.c.l.s8.bf16 %v1204
    %v1322 = vunpack.c.l.s8.bf16 %v1205
    %v1323 = vunpack.c.h.s8.bf16 %v1203
    %v1324 = vunpack.c.h.s8.bf16 %v1204
    %v1325 = vunpack.c.h.s8.bf16 %v1205
    %v1326 = vpack.c.bf16 %v1141, %v1141
    %v1327 = vpack.c.bf16 %v1142, %v1142
    %v1328 = vpack.c.bf16 %v1143, %v1143
    %v1329 = vpack.c.bf16 %v1144, %v1144
    %v1330 = vpack.c.bf16 %v1145, %v1145
    %1331 = vmatprep.subr.bf16.mxu0 %v1207
    %1332 = vmatpush1.bf16.msra.mxu0 %v1206
    %1333 = vmatprep.subr.bf16.mxu0 %v1210
    %1334 = vmatpush1.bf16.msra.mxu0 %v1209
    %1335 = vmatprep.subr.bf16.mxu0 %v1213
    %1336 = vmatpush1.bf16.msra.mxu0 %v1212
    %1337 = vmatprep.subr.bf16.mxu0 %v1216
    %1338 = vmatpush1.bf16.msra.mxu0 %v1215
    %1339 = vmatprep.subr.bf16.mxu0 %v1219
    %1340 = vmatpush1.bf16.msra.mxu0 %v1218
    %1341 = vmatprep.subr.bf16.mxu0 %v1222
    %1342 = vmatpush1.bf16.msra.mxu0 %v1221
    %1343 = vmatprep.subr.bf16.mxu0 %v1225
    %1344 = vmatpush1.bf16.msra.mxu0 %v1224
    %1345 = vmatprep.subr.bf16.mxu0 %v1228
    %1346 = vmatpush1.bf16.msra.mxu0 %v1227
    %1347 = vmatprep.subr.bf16.mxu0 %v1231
    %1348 = vmatpush1.bf16.msra.mxu0 %v1230
    %1349 = vmatprep.subr.bf16.mxu0 %v1234
    %1350 = vmatpush1.bf16.msra.mxu0 %v1233
    %1351 = vmatprep.subr.bf16.mxu0 %v1237
    %1352 = vmatpush1.bf16.msra.mxu0 %v1236
    %1353 = vmatprep.subr.bf16.mxu0 %v1240
    %1354 = vmatpush1.bf16.msra.mxu0 %v1239
    %1355 = vmatprep.subr.bf16.mxu0 %v1243
    %1356 = vmatpush1.bf16.msra.mxu0 %v1242
    %1357 = vmatprep.subr.bf16.mxu0 %v1246
    %1358 = vmatpush1.bf16.msra.mxu0 %v1245
    %1359 = vmatprep.subr.bf16.mxu0 %v1249
    %1360 = vmatpush1.bf16.msra.mxu0 %v1248
    %1361 = vmatprep.subr.bf16.mxu0 %v1252
    %1362 = vmatpush1.bf16.msra.mxu0 %v1251
    %1363 = vmatprep.mubr.bf16.mxu0 %v1327
    %1364 = vmatmul.mubr.bf16.gmra.mrb[0].mxu0 %v1326
    %v1365 = vpop.f32.mrb[0].mxu0
    %v1366 = vadd.f32 0.0, %v1365
    %v1367 = vpop.f32.mrb[0].mxu0
    %v1368 = vadd.f32 0.0, %v1367
    %v1369 = vpop.f32.mrb[0].mxu0
    %v1370 = vpop.f32.mrb[0].mxu0
    %1371 = vdwg.mxu0
    %1372 = vmatprep.subr.bf16.mxu0 %v1255
    %1373 = vmatpush1.bf16.msra.mxu0 %v1254
    %1374 = vmatprep.subr.bf16.mxu0 %v1258
    %1375 = vmatpush1.bf16.msra.mxu0 %v1257
    %1376 = vmatprep.subr.bf16.mxu0 %v1261
    %1377 = vmatpush1.bf16.msra.mxu0 %v1260
    %1378 = vmatprep.subr.bf16.mxu0 %v1264
    %1379 = vmatpush1.bf16.msra.mxu0 %v1263
    %1380 = vmatprep.subr.bf16.mxu0 %v1267
    %1381 = vmatpush1.bf16.msra.mxu0 %v1266
    %1382 = vmatprep.subr.bf16.mxu0 %v1270
    %1383 = vmatpush1.bf16.msra.mxu0 %v1269
    %1384 = vmatprep.subr.bf16.mxu0 %v1273
    %1385 = vmatpush1.bf16.msra.mxu0 %v1272
    %1386 = vmatprep.subr.bf16.mxu0 %v1276
    %1387 = vmatpush1.bf16.msra.mxu0 %v1275
    %1388 = vmatprep.subr.bf16.mxu0 %v1279
    %1389 = vmatpush1.bf16.msra.mxu0 %v1278
    %1390 = vmatprep.subr.bf16.mxu0 %v1282
    %1391 = vmatpush1.bf16.msra.mxu0 %v1281
    %1392 = vmatprep.subr.bf16.mxu0 %v1285
    %1393 = vmatpush1.bf16.msra.mxu0 %v1284
    %1394 = vmatprep.subr.bf16.mxu0 %v1288
    %1395 = vmatpush1.bf16.msra.mxu0 %v1287
    %1396 = vmatprep.subr.bf16.mxu0 %v1291
    %1397 = vmatpush1.bf16.msra.mxu0 %v1290
    %1398 = vmatprep.subr.bf16.mxu0 %v1294
    %1399 = vmatpush1.bf16.msra.mxu0 %v1293
    %1400 = vmatprep.subr.bf16.mxu0 %v1297
    %1401 = vmatpush1.bf16.msra.mxu0 %v1296
    %1402 = vmatprep.subr.bf16.mxu0 %v1300
    %1403 = vmatpush1.bf16.msra.mxu0 %v1299
    %1404 = vmatprep.mubr.bf16.mxu0 %v1329
    %1405 = vmatmul.mubr.bf16.gmra.mrb[0].mxu0 %v1328
    %v1406 = vpop.f32.mrb[0].mxu0
    %v1407 = vadd.f32 %v1366, %v1406
    %v1408 = vpop.f32.mrb[0].mxu0
    %v1409 = vadd.f32 %v1368, %v1408
    %v1410 = vpop.f32.mrb[0].mxu0
    %v1411 = vpop.f32.mrb[0].mxu0
    %1412 = vdwg.mxu0
    %1413 = vmatprep.subr.bf16.mxu0 %v1303
    %1414 = vmatpush1.bf16.msra.mxu0 %v1302
    %1415 = vmatprep.subr.bf16.mxu0 %v1306
    %1416 = vmatpush1.bf16.msra.mxu0 %v1305
    %1417 = vmatprep.subr.bf16.mxu0 %v1309
    %1418 = vmatpush1.bf16.msra.mxu0 %v1308
    %1419 = vmatprep.subr.bf16.mxu0 %v1312
    %1420 = vmatpush1.bf16.msra.mxu0 %v1311
    %1421 = vmatprep.subr.bf16.mxu0 %v1315
    %1422 = vmatpush1.bf16.msra.mxu0 %v1314
    %1423 = vmatprep.subr.bf16.mxu0 %v1318
    %1424 = vmatpush1.bf16.msra.mxu0 %v1317
    %1425 = vmatprep.subr.bf16.mxu0 %v1321
    %1426 = vmatpush1.bf16.msra.mxu0 %v1320
    %1427 = vmatprep.subr.bf16.mxu0 %v1324
    %1428 = vmatpush1.bf16.msra.mxu0 %v1323
    %1429 = vmatprep.subr.bf16.mxu0 0
    %1430 = vmatpush1.bf16.msra.mxu0 0
    %1431 = vmatprep.subr.bf16.mxu0 0
    %1432 = vmatpush1.bf16.msra.mxu0 0
    %1433 = vmatprep.subr.bf16.mxu0 0
    %1434 = vmatpush1.bf16.msra.mxu0 0
    %1435 = vmatprep.subr.bf16.mxu0 0
    %1436 = vmatpush1.bf16.msra.mxu0 0
    %1437 = vmatprep.subr.bf16.mxu0 0
    %1438 = vmatpush1.bf16.msra.mxu0 0
    %1439 = vmatprep.subr.bf16.mxu0 0
    %1440 = vmatpush1.bf16.msra.mxu0 0
    %1441 = vmatprep.subr.bf16.mxu0 0
    %1442 = vmatpush1.bf16.msra.mxu0 0
    %1443 = vmatprep.subr.bf16.mxu0 0
    %1444 = vmatpush1.bf16.msra.mxu0 0
    %1445 = vmatprep.mubr.bf16.mxu0 0
    %1446 = vmatmul.mubr.bf16.gmra.mrb[0].mxu0 %v1330
    %v1447 = vpop.f32.mrb[0].mxu0
    %v1448 = vadd.f32 %v1407, %v1447
    %v1449 = vpop.f32.mrb[0].mxu0
    %v1450 = vadd.f32 %v1409, %v1449
    %v1451 = vpop.f32.mrb[0].mxu0
    %v1452 = vpop.f32.mrb[0].mxu0
    %1453 = vdwg.mxu0
    %1454 = vmatprep.subr.bf16.mxu0 0
    %1455 = vmatpush1.bf16.msra.mxu0 %v1208
    %1456 = vmatprep.subr.bf16.mxu0 0
    %1457 = vmatpush1.bf16.msra.mxu0 %v1211
    %1458 = vmatprep.subr.bf16.mxu0 0
    %1459 = vmatpush1.bf16.msra.mxu0 %v1214
    %1460 = vmatprep.subr.bf16.mxu0 0
    %1461 = vmatpush1.bf16.msra.mxu0 %v1217
    %1462 = vmatprep.subr.bf16.mxu0 0
    %1463 = vmatpush1.bf16.msra.mxu0 %v1220
    %1464 = vmatprep.subr.bf16.mxu0 0
    %1465 = vmatpush1.bf16.msra.mxu0 %v1223
    %1466 = vmatprep.subr.bf16.mxu0 0
    %1467 = vmatpush1.bf16.msra.mxu0 %v1226
    %1468 = vmatprep.subr.bf16.mxu0 0
    %1469 = vmatpush1.bf16.msra.mxu0 %v1229
    %1470 = vmatprep.subr.bf16.mxu0 0
    %1471 = vmatpush1.bf16.msra.mxu0 %v1232
    %1472 = vmatprep.subr.bf16.mxu0 0
    %1473 = vmatpush1.bf16.msra.mxu0 %v1235
    %1474 = vmatprep.subr.bf16.mxu0 0
    %1475 = vmatpush1.bf16.msra.mxu0 %v1238
    %1476 = vmatprep.subr.bf16.mxu0 0
    %1477 = vmatpush1.bf16.msra.mxu0 %v1241
    %1478 = vmatprep.subr.bf16.mxu0 0
    %1479 = vmatpush1.bf16.msra.mxu0 %v1244
    %1480 = vmatprep.subr.bf16.mxu0 0
    %1481 = vmatpush1.bf16.msra.mxu0 %v1247
    %1482 = vmatprep.subr.bf16.mxu0 0
    %1483 = vmatpush1.bf16.msra.mxu0 %v1250
    %1484 = vmatprep.subr.bf16.mxu0 0
    %1485 = vmatpush1.bf16.msra.mxu0 %v1253
    %1486 = vmatprep.mubr.bf16.mxu0 %v1327
    %1487 = vmatmul.mubr.bf16.gmra.mrb[0].mxu0 %v1326
    %v1488 = vpop.f32.mrb[0].mxu0
    %v1489 = vadd.f32 0.0, %v1488
    %v1490 = vpop.f32.mrb[0].mxu0
    %v1491 = vpop.f32.mrb[0].mxu0
    %v1492 = vpop.f32.mrb[0].mxu0
    %1493 = vdwg.mxu0
    %1494 = vmatprep.subr.bf16.mxu0 0
    %1495 = vmatpush1.bf16.msra.mxu0 %v1256
    %1496 = vmatprep.subr.bf16.mxu0 0
    %1497 = vmatpush1.bf16.msra.mxu0 %v1259
    %1498 = vmatprep.subr.bf16.mxu0 0
    %1499 = vmatpush1.bf16.msra.mxu0 %v1262
    %1500 = vmatprep.subr.bf16.mxu0 0
    %1501 = vmatpush1.bf16.msra.mxu0 %v1265
    %1502 = vmatprep.subr.bf16.mxu0 0
    %1503 = vmatpush1.bf16.msra.mxu0 %v1268
    %1504 = vmatprep.subr.bf16.mxu0 0
    %1505 = vmatpush1.bf16.msra.mxu0 %v1271
    %1506 = vmatprep.subr.bf16.mxu0 0
    %1507 = vmatpush1.bf16.msra.mxu0 %v1274
    %1508 = vmatprep.subr.bf16.mxu0 0
    %1509 = vmatpush1.bf16.msra.mxu0 %v1277
    %1510 = vmatprep.subr.bf16.mxu0 0
    %1511 = vmatpush1.bf16.msra.mxu0 %v1280
    %1512 = vmatprep.subr.bf16.mxu0 0
    %1513 = vmatpush1.bf16.msra.mxu0 %v1283
    %1514 = vmatprep.subr.bf16.mxu0 0
    %1515 = vmatpush1.bf16.msra.mxu0 %v1286
    %1516 = vmatprep.subr.bf16.mxu0 0
    %1517 = vmatpush1.bf16.msra.mxu0 %v1289
    %1518 = vmatprep.subr.bf16.mxu0 0
    %1519 = vmatpush1.bf16.msra.mxu0 %v1292
    %1520 = vmatprep.subr.bf16.mxu0 0
    %1521 = vmatpush1.bf16.msra.mxu0 %v1295
    %1522 = vmatprep.subr.bf16.mxu0 0
    %1523 = vmatpush1.bf16.msra.mxu0 %v1298
    %1524 = vmatprep.subr.bf16.mxu0 0
    %1525 = vmatpush1.bf16.msra.mxu0 %v1301
    %1526 = vmatprep.mubr.bf16.mxu0 %v1329
    %1527 = vmatmul.mubr.bf16.gmra.mrb[0].mxu0 %v1328
    %v1528 = vpop.f32.mrb[0].mxu0
    %v1529 = vadd.f32 %v1489, %v1528
    %v1530 = vpop.f32.mrb[0].mxu0
    %v1531 = vpop.f32.mrb[0].mxu0
    %v1532 = vpop.f32.mrb[0].mxu0
    %1533 = vdwg.mxu0
    %1534 = vmatprep.subr.bf16.mxu0 0
    %1535 = vmatpush1.bf16.msra.mxu0 %v1304
    %1536 = vmatprep.subr.bf16.mxu0 0
    %1537 = vmatpush1.bf16.msra.mxu0 %v1307
    %1538 = vmatprep.subr.bf16.mxu0 0
    %1539 = vmatpush1.bf16.msra.mxu0 %v1310
    %1540 = vmatprep.subr.bf16.mxu0 0
    %1541 = vmatpush1.bf16.msra.mxu0 %v1313
    %1542 = vmatprep.subr.bf16.mxu0 0
    %1543 = vmatpush1.bf16.msra.mxu0 %v1316
    %1544 = vmatprep.subr.bf16.mxu0 0
    %1545 = vmatpush1.bf16.msra.mxu0 %v1319
    %1546 = vmatprep.subr.bf16.mxu0 0
    %1547 = vmatpush1.bf16.msra.mxu0 %v1322
    %1548 = vmatprep.subr.bf16.mxu0 0
    %1549 = vmatpush1.bf16.msra.mxu0 %v1325
    %1550 = vmatprep.subr.bf16.mxu0 0
    %1551 = vmatpush1.bf16.msra.mxu0 0
    %1552 = vmatprep.subr.bf16.mxu0 0
    %1553 = vmatpush1.bf16.msra.mxu0 0
    %1554 = vmatprep.subr.bf16.mxu0 0
    %1555 = vmatpush1.bf16.msra.mxu0 0
    %1556 = vmatprep.subr.bf16.mxu0 0
    %1557 = vmatpush1.bf16.msra.mxu0 0
    %1558 = vmatprep.subr.bf16.mxu0 0
    %1559 = vmatpush1.bf16.msra.mxu0 0
    %1560 = vmatprep.subr.bf16.mxu0 0
    %1561 = vmatpush1.bf16.msra.mxu0 0
    %1562 = vmatprep.subr.bf16.mxu0 0
    %1563 = vmatpush1.bf16.msra.mxu0 0
    %1564 = vmatprep.subr.bf16.mxu0 0
    %1565 = vmatpush1.bf16.msra.mxu0 0
    %1566 = vmatprep.mubr.bf16.mxu0 0
    %1567 = vmatmul.mubr.bf16.gmra.mrb[0].mxu0 %v1330
    %v1568 = vpop.f32.mrb[0].mxu0
    %v1569 = vadd.f32 %v1529, %v1568
    %v1570 = vpop.f32.mrb[0].mxu0
    %v1571 = vpop.f32.mrb[0].mxu0
    %v1572 = vpop.f32.mrb[0].mxu0
    %1573 = vdwg.mxu0
    %v1574 = vld [vmem:[%s4] ss:$2 sm:$0x7]
    %v1576 = vlaneseq
    %v1577 = vshrl.u32 %v1576, 7
    %v1578 = vsub.s32 0, %v1577
    %v1579 = vrot.slane %v1574, %v1578
    %v1580 = vlaneseq
    %v1581 = vshrl.u32 %v1580, 7
    %v1582 = vsub.s32 1, %v1581
    %v1583 = vrot.slane %v1574, %v1582
    %v1584 = vlaneseq
    %v1585 = vshrl.u32 %v1584, 7
    %v1586 = vsub.s32 2, %v1585
    %v1587 = vrot.slane %v1574, %v1586
    %v1591 = vmul.f32 %v1448, %v1579
    %v1592 = vmul.f32 %v1450, %v1583
    %v1593 = vmul.f32 %v1569, %v1587
    %s1594 = scalar_lea.vmem %s4, 1
    %v1595 = vld [vmem:[%s1594] ss:$2 sm:$0x7]
    %v1597 = vlaneseq
    %v1598 = vshrl.u32 %v1597, 7
    %v1599 = vsub.s32 0, %v1598
    %v1600 = vrot.slane %v1595, %v1599
    %v1601 = vlaneseq
    %v1602 = vshrl.u32 %v1601, 7
    %v1603 = vsub.s32 1, %v1602
    %v1604 = vrot.slane %v1595, %v1603
    %v1605 = vlaneseq
    %v1606 = vshrl.u32 %v1605, 7
    %v1607 = vsub.s32 2, %v1606
    %v1608 = vrot.slane %v1595, %v1607
    %v1612 = vadd.f32 %v1591, %v1600
    %v1613 = vadd.f32 %v1592, %v1604
    %v1614 = vadd.f32 %v1593, %v1608
    %v1615 = vmax.f32 %v1612, 0.0
    %v1616 = vmax.f32 %v1613, 0.0
    %v1617 = vmax.f32 %v1614, 0.0
    %v1618 = vld [vmem:[#allocation10] sm:$0xff]
    %v1619 = vld [vmem:[#allocation10 + $0x8] sm:$0xff]
    %v1620 = vld [vmem:[#allocation10 + $0x10] sm:$0xff]
    %v1621 = vld [vmem:[#allocation10 + $0x18] sm:$0xff]
    %v1622 = vld [vmem:[#allocation10 + $0x20] sm:$0xff]
    %v1623 = vld [vmem:[#allocation10 + $0x28] sm:$0xff]
    %v1624 = vld [vmem:[#allocation10 + $0x30] sm:$0xff]
    %v1625 = vld [vmem:[#allocation10 + $0x38] sm:$0xff]
    %v1626 = vld [vmem:[#allocation10 + $0x40] sm:$0xff]
    %v1627 = vld [vmem:[#allocation10 + $0x48] sm:$0xff]
    %v1628 = vld [vmem:[#allocation10 + $0x50] sm:$0xff]
    %v1629 = vld [vmem:[#allocation10 + $0x58] sm:$0xff]
    %v1630 = vunpack.c.l.s8.bf16 %v1618
    %v1631 = vunpack.c.h.s8.bf16 %v1618
    %v1632 = vunpack.c.l.s8.bf16 %v1619
    %v1633 = vunpack.c.h.s8.bf16 %v1619
    %v1634 = vunpack.c.l.s8.bf16 %v1620
    %v1635 = vunpack.c.h.s8.bf16 %v1620
    %v1636 = vunpack.c.l.s8.bf16 %v1621
    %v1637 = vunpack.c.h.s8.bf16 %v1621
    %v1638 = vunpack.c.l.s8.bf16 %v1622
    %v1639 = vunpack.c.h.s8.bf16 %v1622
    %v1640 = vunpack.c.l.s8.bf16 %v1623
    %v1641 = vunpack.c.h.s8.bf16 %v1623
    %v1642 = vunpack.c.l.s8.bf16 %v1624
    %v1643 = vunpack.c.h.s8.bf16 %v1624
    %v1644 = vunpack.c.l.s8.bf16 %v1625
    %v1645 = vunpack.c.h.s8.bf16 %v1625
    %v1646 = vunpack.c.l.s8.bf16 %v1626
    %v1647 = vunpack.c.h.s8.bf16 %v1626
    %v1648 = vunpack.c.l.s8.bf16 %v1627
    %v1649 = vunpack.c.h.s8.bf16 %v1627
    %v1650 = vunpack.c.l.s8.bf16 %v1628
    %v1651 = vunpack.c.h.s8.bf16 %v1628
    %v1652 = vunpack.c.l.s8.bf16 %v1629
    %v1653 = vunpack.c.h.s8.bf16 %v1629
    %v1654 = vpack.c.bf16 %v1615, %v1615
    %v1655 = vpack.c.bf16 %v1616, %v1616
    %v1656 = vpack.c.bf16 %v1617, %v1617
    %1657 = vmatprep.subr.bf16.mxu0 0
    %1658 = vmatpush1.bf16.msra.mxu0 %v1630
    %1659 = vmatprep.subr.bf16.mxu0 0
    %1660 = vmatpush1.bf16.msra.mxu0 %v1631
    %1661 = vmatprep.subr.bf16.mxu0 0
    %1662 = vmatpush1.bf16.msra.mxu0 %v1632
    %1663 = vmatprep.subr.bf16.mxu0 0
    %1664 = vmatpush1.bf16.msra.mxu0 %v1633
    %1665 = vmatprep.subr.bf16.mxu0 0
    %1666 = vmatpush1.bf16.msra.mxu0 %v1634
    %1667 = vmatprep.subr.bf16.mxu0 0
    %1668 = vmatpush1.bf16.msra.mxu0 %v1635
    %1669 = vmatprep.subr.bf16.mxu0 0
    %1670 = vmatpush1.bf16.msra.mxu0 %v1636
    %1671 = vmatprep.subr.bf16.mxu0 0
    %1672 = vmatpush1.bf16.msra.mxu0 %v1637
    %1673 = vmatprep.subr.bf16.mxu0 0
    %1674 = vmatpush1.bf16.msra.mxu0 %v1638
    %1675 = vmatprep.subr.bf16.mxu0 0
    %1676 = vmatpush1.bf16.msra.mxu0 %v1639
    %1677 = vmatprep.subr.bf16.mxu0 0
    %1678 = vmatpush1.bf16.msra.mxu0 %v1640
    %1679 = vmatprep.subr.bf16.mxu0 0
    %1680 = vmatpush1.bf16.msra.mxu0 %v1641
    %1681 = vmatprep.subr.bf16.mxu0 0
    %1682 = vmatpush1.bf16.msra.mxu0 %v1642
    %1683 = vmatprep.subr.bf16.mxu0 0
    %1684 = vmatpush1.bf16.msra.mxu0 %v1643
    %1685 = vmatprep.subr.bf16.mxu0 0
    %1686 = vmatpush1.bf16.msra.mxu0 %v1644
    %1687 = vmatprep.subr.bf16.mxu0 0
    %1688 = vmatpush1.bf16.msra.mxu0 %v1645
    %1689 = vmatprep.mubr.bf16.mxu0 %v1655
    %1690 = vmatmul.mubr.bf16.gmra.mrb[0].mxu0 %v1654
    %v1691 = vpop.f32.mrb[0].mxu0
    %v1692 = vadd.f32 0.0, %v1691
    %v1693 = vpop.f32.mrb[0].mxu0
    %v1694 = vpop.f32.mrb[0].mxu0
    %v1695 = vpop.f32.mrb[0].mxu0
    %1696 = vdwg.mxu0
    %1697 = vmatprep.subr.bf16.mxu0 0
    %1698 = vmatpush1.bf16.msra.mxu0 %v1646
    %1699 = vmatprep.subr.bf16.mxu0 0
    %1700 = vmatpush1.bf16.msra.mxu0 %v1647
    %1701 = vmatprep.subr.bf16.mxu0 0
    %1702 = vmatpush1.bf16.msra.mxu0 %v1648
    %1703 = vmatprep.subr.bf16.mxu0 0
    %1704 = vmatpush1.bf16.msra.mxu0 %v1649
    %1705 = vmatprep.subr.bf16.mxu0 0
    %1706 = vmatpush1.bf16.msra.mxu0 %v1650
    %1707 = vmatprep.subr.bf16.mxu0 0
    %1708 = vmatpush1.bf16.msra.mxu0 %v1651
    %1709 = vmatprep.subr.bf16.mxu0 0
    %1710 = vmatpush1.bf16.msra.mxu0 %v1652
    %1711 = vmatprep.subr.bf16.mxu0 0
    %1712 = vmatpush1.bf16.msra.mxu0 %v1653
    %1713 = vmatprep.subr.bf16.mxu0 0
    %1714 = vmatpush1.bf16.msra.mxu0 0
    %1715 = vmatprep.subr.bf16.mxu0 0
    %1716 = vmatpush1.bf16.msra.mxu0 0
    %1717 = vmatprep.subr.bf16.mxu0 0
    %1718 = vmatpush1.bf16.msra.mxu0 0
    %1719 = vmatprep.subr.bf16.mxu0 0
    %1720 = vmatpush1.bf16.msra.mxu0 0
    %1721 = vmatprep.subr.bf16.mxu0 0
    %1722 = vmatpush1.bf16.msra.mxu0 0
    %1723 = vmatprep.subr.bf16.mxu0 0
    %1724 = vmatpush1.bf16.msra.mxu0 0
    %1725 = vmatprep.subr.bf16.mxu0 0
    %1726 = vmatpush1.bf16.msra.mxu0 0
    %1727 = vmatprep.subr.bf16.mxu0 0
    %1728 = vmatpush1.bf16.msra.mxu0 0
    %1729 = vmatprep.mubr.bf16.mxu0 0
    %1730 = vmatmul.mubr.bf16.gmra.mrb[0].mxu0 %v1656
    %v1731 = vpop.f32.mrb[0].mxu0
    %v1732 = vadd.f32 %v1692, %v1731
    %v1733 = vpop.f32.mrb[0].mxu0
    %v1734 = vpop.f32.mrb[0].mxu0
    %v1735 = vpop.f32.mrb[0].mxu0
    %1736 = vdwg.mxu0
    %v1737 = vld [vmem:[%s6] sm:$0x1]
    %v1738 = vlaneseq
    %v1739 = vshrl.u32 %v1738, 7
    %v1740 = vsub.s32 0, %v1739
    %v1741 = vrot.slane %v1737, %v1740
    %v1742 = vmul.f32 %v1732, %v1741
    %v1743 = vld [vmem:[%s6 + $0x1] sm:$0x1]
    %v1744 = vlaneseq
    %v1745 = vshrl.u32 %v1744, 7
    %v1746 = vsub.s32 0, %v1745
    %v1747 = vrot.slane %v1743, %v1746
    %v1748 = vadd.f32 %v1742, %v1747
    %1749 = vst [vmem:[#allocation11] sm:$0xff] %v1748
    // Predicated region
    $region50: #{tpu_custom_call.1} parent=1 // pred_check
      _
    $region51: #{tpu_custom_call.1} parent=1 // pred_check_branch
      %1751 = sbr.rel (0) target = $region53
    $region52: #{tpu_custom_call.1} parent=1 // pred_region
      %s1753 = ssub.s32 128, 128
      %1754 = vsyncadd [#allocation4], %s1753
      %s1756 = sshll.u32 [#allocation11], 4
      %s1757 = int_to_ptr.vmem [resolvable:$true] %s1756
      %1759 = dma.vmem_to_hbm [thread:$0]  %s1757, 128, %s7, [#allocation4]
    $region53: #{tpu_custom_call.1} parent=1 // pred_fallthru
      _
    // Predicated region
    $region54: #{tpu_custom_call.1} parent=1 // pred_check
      _
    $region55: #{tpu_custom_call.1} parent=1 // pred_check_branch
      %1761 = sbr.rel (0) target = $region57
    $region56: #{tpu_custom_call.1} parent=1 // pred_region
      %1762 = dma.done [#allocation4], 128
    $region57: #{tpu_custom_call.1} parent=1 // pred_fallthru
      _
    %1763 = vsyncpa [#allocation3], 1
    %1764 = vsyncpa [#allocation6], 1
    %1765 = vsyncpa [#allocation9], 1
    %1766 = vsyncpa [#allocation4], 1

</llo_original>
